<compile_context>
chip_gen: v5e
topology: v5e:2x2
jax: 0.10.0
libtpu: 0.0.40
codegen_flags: <defaults>
</compile_context>

<pallas_src>
import math

import numpy as np
import jax
import jax.numpy as jnp
from jax.experimental import pallas as pl

# ----------------------------- small BERT config -----------------------------
VOCAB = 128          # vocab_size (lane-dense)
HIDDEN = 32          # hidden_size
NUM_LAYERS = 2       # num_hidden_layers
NUM_HEADS = 4        # num_attention_heads
HEAD_DIM = HIDDEN // NUM_HEADS
INTERMEDIATE = 64    # intermediate_size
MAX_POS = 16         # max_position_embeddings
LN_EPS = 1e-12       # BERT layer_norm_eps

BATCH = 2
SEQ = 8
TOKENS = BATCH * SEQ  # flattened (B*S) token rows inside the kernel

_ATTN_SCALE = 1.0 / math.sqrt(HEAD_DIM)


# ------------------------------ in-kernel helpers ------------------------------
def _layer_norm(x, gamma, beta):
    mean = jnp.mean(x, axis=-1, keepdims=True)
    var = jnp.mean((x - mean) ** 2, axis=-1, keepdims=True)
    return (x - mean) * jax.lax.rsqrt(var + LN_EPS) * gamma + beta


def _gelu(x):
    # tanh-approximate GELU (routes through the EUP slot); HF BERT's exact erf
    # GELU differs by <~1e-3 relative.
    return 0.5 * x * (1.0 + jnp.tanh(0.7978845608028654 * (x + 0.044715 * x * x * x)))


# ------------------------------ fused forward kernel ---------------------------
# Slab layouts (all f32):
#   emb_ref : (V + MAX_POS + 2, H)  rows [0:V] word, [V:V+MAX_POS] pos, last 2 type
#   lw_ref  : (L, H, 3H + H + I)    cols [0:3H] Wqkv (Q pre-scaled), [3H:4H] Wo, [4H:4H+I] Wi
#   lf_ref  : (L, I, H)             Wf
#   lb_ref  : (L, 8, 3H)            rows: qkv_b, o_b, i_b, f_b, ln1_g, ln1_b, ln2_g, ln2_b
#   hw_ref  : (H, V + H)            cols [0:V] tied decoder W, [V:V+H] mlm transform W
#   hb_ref  : (8, V)                rows: dec_b, mlm_b, mlm_ln_g, mlm_ln_b, emb_ln_g, emb_ln_b
def _bert_fused_kernel(tok_ref, bias_ref, emb_ref, lw_ref, lf_ref, lb_ref,
                       hw_ref, hb_ref, logits_ref, loss_ref):
    ids = tok_ref[:, 0:1]                                       # (T, 1) int32
    labels = tok_ref[:, 1:2]                                    # (T, 1) int32

    # ---- embeddings: one-hot gather (one MXU pass) + pos + type, then LN -------
    vcol = jax.lax.broadcasted_iota(jnp.int32, (TOKENS, VOCAB), 1)
    onehot_ids = (vcol == ids).astype(jnp.float32)              # (T, V)
    x = jnp.dot(onehot_ids, emb_ref[0:VOCAB, :],
                preferred_element_type=jnp.float32)             # (T, H) word emb
    pos_type = (emb_ref[VOCAB:VOCAB + SEQ, :]
                + emb_ref[VOCAB + MAX_POS:VOCAB + MAX_POS + 1, :])   # (S, H)
    x = x + jnp.concatenate([pos_type] * BATCH, axis=0)         # token_type_ids = 0
    h = _layer_norm(x, hb_ref[4:5, 0:HIDDEN], hb_ref[5:6, 0:HIDDEN])

    attn_bias = bias_ref[...]                                   # (T, T) block-diag + pad

    for layer in range(NUM_LAYERS):
        lw = lw_ref[layer]                                      # (H, 3H + H + I)
        lb = lb_ref[layer]                                      # (8, 3H)

        # fused QKV projection (attention scale already folded into Q columns)
        qkv = (jnp.dot(h, lw[:, 0:3 * HIDDEN], preferred_element_type=jnp.float32)
               + lb[0:1, 0:3 * HIDDEN])                         # (T, 3H)

        # per-head attention over both batch rows at once; fold each head's
        # context straight into the output projection (no lane concat)
        attn = jnp.zeros((TOKENS, HIDDEN), jnp.float32)
        for hd in range(NUM_HEADS):
            lo = hd * HEAD_DIM
            q = qkv[:, lo:lo + HEAD_DIM]                        # (T, DH)
            k = qkv[:, HIDDEN + lo:HIDDEN + lo + HEAD_DIM]
            v = qkv[:, 2 * HIDDEN + lo:2 * HIDDEN + lo + HEAD_DIM]
            s = jax.lax.dot_general(q, k, (((1,), (1,)), ((), ())),
                                    preferred_element_type=jnp.float32) + attn_bias
            s = s - jnp.max(s, axis=-1, keepdims=True)
            p = jnp.exp(s)
            p = p / jnp.sum(p, axis=-1, keepdims=True)
            ctx = jnp.dot(p, v, preferred_element_type=jnp.float32)    # (T, DH)
            attn = attn + jnp.dot(ctx, lw[lo:lo + HEAD_DIM, 3 * HIDDEN:4 * HIDDEN],
                                  preferred_element_type=jnp.float32)
        attn = attn + lb[1:2, 0:HIDDEN]                         # o_b
        h = _layer_norm(attn + h, lb[4:5, 0:HIDDEN], lb[5:6, 0:HIDDEN])

        # FFN: dense + GELU + dense + residual + LN2
        inter = _gelu(jnp.dot(h, lw[:, 4 * HIDDEN:4 * HIDDEN + INTERMEDIATE],
                              preferred_element_type=jnp.float32)
                      + lb[2:3, 0:INTERMEDIATE])                # (T, I)
        ffn = (jnp.dot(inter, lf_ref[layer], preferred_element_type=jnp.float32)
               + lb[3:4, 0:HIDDEN])
        h = _layer_norm(ffn + h, lb[6:7, 0:HIDDEN], lb[7:8, 0:HIDDEN])

    # ---- MLM head: dense + GELU + LN + tied decoder to vocab (lane-dense) ------
    t = _gelu(jnp.dot(h, hw_ref[:, VOCAB:VOCAB + HIDDEN],
                      preferred_element_type=jnp.float32) + hb_ref[1:2, 0:HIDDEN])
    t = _layer_norm(t, hb_ref[2:3, 0:HIDDEN], hb_ref[3:4, 0:HIDDEN])
    logits = (jnp.dot(t, hw_ref[:, 0:VOCAB], preferred_element_type=jnp.float32)
              + hb_ref[0:1, :])                                 # (T, V)
    logits_ref[...] = logits

    # ---- masked-LM cross-entropy, finalized in-kernel ---------------------------
    m = jnp.max(logits, axis=-1, keepdims=True)
    shifted = logits - m
    lse = jnp.log(jnp.sum(jnp.exp(shifted), axis=-1, keepdims=True))
    logp = shifted - lse                                        # log-softmax
    onehot_lab = (vcol == labels).astype(jnp.float32)
    nll = -jnp.sum(onehot_lab * logp, axis=-1, keepdims=True)   # (T, 1)
    valid = (labels >= 0).astype(jnp.float32)                   # ignore_index = -100
    nll_sum = jnp.sum(nll * valid, axis=0, keepdims=True)       # (1, 1)
    val_sum = jnp.sum(valid, axis=0, keepdims=True)             # (1, 1)
    loss_ref[...] = nll_sum / val_sum    # NaN if all labels ignored (matches torch CE)


# ---------------------------- parameter construction ---------------------------
def init_params(key):
    keys = iter(jax.random.split(key, 32))

    def nrm(shape):
        return 0.02 * jax.random.normal(next(keys), shape, dtype=jnp.float32)

    H, I, V = HIDDEN, INTERMEDIATE, VOCAB

    word_emb = nrm((V, H))
    pos_emb = nrm((MAX_POS, H))
    type_emb = nrm((2, H))
    emb_slab = jnp.concatenate([word_emb, pos_emb, type_emb], axis=0)  # (V+MAX_POS+2, H)

    def pad_to(row, width):
        return jnp.pad(row, ((0, 0), (0, width - row.shape[1])))

    ones_h, zeros_h = jnp.ones((1, H), jnp.float32), jnp.zeros((1, H), jnp.float32)

    lw, lf, lb = [], [], []
    for _ in range(NUM_LAYERS):
        wq = nrm((H, H)) * _ATTN_SCALE        # 1/sqrt(head_dim) folded into Q weights
        wk, wv = nrm((H, H)), nrm((H, H))
        o_w, i_w, f_w = nrm((H, H)), nrm((H, I)), nrm((I, H))
        lw.append(jnp.concatenate([wq, wk, wv, o_w, i_w], axis=1))      # (H, 3H+H+I)
        lf.append(f_w)                                                   # (I, H)
        lb.append(jnp.concatenate([
            jnp.zeros((1, 3 * H), jnp.float32),   # row 0: qkv_b (Q part would be pre-scaled)
            pad_to(zeros_h, 3 * H),               # row 1: o_b
            pad_to(jnp.zeros((1, I), jnp.float32), 3 * H),  # row 2: i_b
            pad_to(zeros_h, 3 * H),               # row 3: f_b
            pad_to(ones_h, 3 * H),                # row 4: ln1 gamma
            pad_to(zeros_h, 3 * H),               # row 5: ln1 beta
            pad_to(ones_h, 3 * H),                # row 6: ln2 gamma
            pad_to(zeros_h, 3 * H),               # row 7: ln2 beta
        ], axis=0))                                                      # (8, 3H)
    layer_w = jnp.stack(lw, axis=0)
    layer_f = jnp.stack(lf, axis=0)
    layer_b = jnp.stack(lb, axis=0)

    mlm_w = nrm((H, H))
    # TODO(synk): decoder weight is a materialized copy of word_emb.T (forward-only tie).
    dec_w = word_emb.T
    head_w = jnp.concatenate([dec_w, mlm_w], axis=1)                     # (H, V + H)
    head_b = jnp.concatenate([
        jnp.zeros((1, V), jnp.float32),   # row 0: dec_b
        pad_to(zeros_h, V),               # row 1: mlm_b
        pad_to(ones_h, V),                # row 2: mlm-head LN gamma
        pad_to(zeros_h, V),               # row 3: mlm-head LN beta
        pad_to(ones_h, V),                # row 4: embedding LN gamma
        pad_to(zeros_h, V),               # row 5: embedding LN beta
        jnp.zeros((2, V), jnp.float32),   # rows 6-7: unused (fills the (8,128) tile)
    ], axis=0)                                                           # (8, V)

    return {"emb_slab": emb_slab, "layer_w": layer_w, "layer_f": layer_f,
            "layer_b": layer_b, "head_w": head_w, "head_b": head_b}


# --------------------------------- forward pass --------------------------------
def bert_mlm_forward(params, input_ids, attention_mask=None, labels=None):
    """Mirrors BertForMaskedLM(..., return_dict=False):
       returns (loss, prediction_scores) if labels is not None, else (prediction_scores,)."""
    B, S = input_ids.shape
    assert B == BATCH and S == SEQ
    T = B * S
    if attention_mask is None:
        attention_mask = jnp.ones((B, S), jnp.int32)
    has_labels = labels is not None
    if labels is None:
        labels = jnp.full((B, S), -100, jnp.int32)

    # ids + labels ride together into VMEM; gather / CE one-hots happen in-kernel
    tok = jnp.stack([input_ids.reshape(T), labels.reshape(T)], axis=1).astype(jnp.int32)

    # block-diagonal additive attention bias: per-batch key padding plus a -1e9
    # wall between batch rows, so both rows share one (T,T) attention per head
    key_pad = ((1.0 - attention_mask.astype(jnp.float32)) * -10000.0).reshape(1, T)
    batch_id = np.repeat(np.arange(B), S)
    cross = np.where(batch_id[:, None] == batch_id[None, :], 0.0, -1e9).astype(np.float32)
    attn_bias = cross + key_pad                                          # (T, T)

    logits_flat, loss = pl.pallas_call(
        _bert_fused_kernel,
        out_shape=(jax.ShapeDtypeStruct((T, VOCAB), jnp.float32),
                   jax.ShapeDtypeStruct((1, 1), jnp.float32)),
    )(tok, attn_bias, params["emb_slab"], params["layer_w"], params["layer_f"],
      params["layer_b"], params["head_w"], params["head_b"])

    prediction_scores = logits_flat.reshape(B, S, VOCAB)
    if not has_labels:
        return (prediction_scores,)
    return (loss[0, 0], prediction_scores)


# ------------------------------------ main -------------------------------------
if __name__ == "__main__":
    key = jax.random.PRNGKey(0)
    pkey, ikey, lkey = jax.random.split(key, 3)

    params = init_params(pkey)
    input_ids = jax.random.randint(ikey, (BATCH, SEQ), 0, VOCAB, dtype=jnp.int32)
    attention_mask = jnp.ones((BATCH, SEQ), jnp.int32).at[1, -2:].set(0)  # some padding
    labels = jax.random.randint(lkey, (BATCH, SEQ), 0, VOCAB, dtype=jnp.int32)

    fwd = jax.jit(bert_mlm_forward)
    loss, logits = fwd(params, input_ids, attention_mask, labels)
    jax.block_until_ready((loss, logits))
    assert logits.shape == (BATCH, SEQ, VOCAB)
    assert loss.shape == ()
    print("KERNEL_OK")
</pallas_src>

<mosaic_0001>
module attributes {stable_mosaic.version = 11 : i64} {
  func.func @_bert_fused_kernel(%arg0: memref<16x2xi32, #tpu.memory_space<vmem>>, %arg1: memref<16x16xf32, #tpu.memory_space<vmem>>, %arg2: memref<146x32xf32, #tpu.memory_space<vmem>>, %arg3: memref<2x32x192xf32, #tpu.memory_space<vmem>>, %arg4: memref<2x64x32xf32, #tpu.memory_space<vmem>>, %arg5: memref<2x8x96xf32, #tpu.memory_space<vmem>>, %arg6: memref<32x160xf32, #tpu.memory_space<vmem>>, %arg7: memref<8x128xf32, #tpu.memory_space<vmem>>, %arg8: memref<16x128xf32, #tpu.memory_space<vmem>>, %arg9: memref<1x1xf32, #tpu.memory_space<vmem>>) attributes {dimension_semantics = [], scalar_prefetch = 0 : i64, scratch_operands = 0 : i64, tpu.core_type = #tpu.core_type<tc>} {
    %c0 = arith.constant 0 : index
    %c0_0 = arith.constant 0 : index
    %0 = vector.load %arg0[%c0, %c0_0] : memref<16x2xi32, #tpu.memory_space<vmem>>, vector<16x1xi32>
    %c0_1 = arith.constant 0 : index
    %c1 = arith.constant 1 : index
    %1 = vector.load %arg0[%c0_1, %c1] : memref<16x2xi32, #tpu.memory_space<vmem>>, vector<16x1xi32>
    %2 = tpu.iota {dimensions = array<i32: 1>} : vector<16x128xi32>
    %3 = vector.broadcast %0 : vector<16x1xi32> to vector<16x128xi32>
    %4 = arith.cmpi eq, %2, %3 : vector<16x128xi32>
    %5 = arith.extui %4 : vector<16x128xi1> to vector<16x128xi32>
    %6 = arith.sitofp %5 : vector<16x128xi32> to vector<16x128xf32>
    %c0_2 = arith.constant 0 : index
    %c0_3 = arith.constant 0 : index
    %7 = vector.load %arg2[%c0_2, %c0_3] : memref<146x32xf32, #tpu.memory_space<vmem>>, vector<128x32xf32>
    %cst = arith.constant dense<0.000000e+00> : vector<16x32xf32>
    %8 = tpu.matmul %6, %7, %cst {dimension_numbers = #tpu.dot_dimension_numbers<[1], [0], [0], [1], [0, 0, 1, 1], [], []>} : vector<16x128xf32>, vector<128x32xf32>, vector<16x32xf32> -> vector<16x32xf32>
    %c128 = arith.constant 128 : index
    %c0_4 = arith.constant 0 : index
    %9 = vector.load %arg2[%c128, %c0_4] : memref<146x32xf32, #tpu.memory_space<vmem>>, vector<8x32xf32>
    %c144 = arith.constant 144 : index
    %c0_5 = arith.constant 0 : index
    %10 = vector.load %arg2[%c144, %c0_5] : memref<146x32xf32, #tpu.memory_space<vmem>>, vector<1x32xf32>
    %11 = vector.broadcast %10 : vector<1x32xf32> to vector<8x32xf32>
    %12 = arith.addf %9, %11 : vector<8x32xf32>
    %13 = tpu.concatenate %12, %12 in 0 : vector<8x32xf32>, vector<8x32xf32> -> vector<16x32xf32>
    %14 = arith.addf %8, %13 : vector<16x32xf32>
    %c4 = arith.constant 4 : index
    %c0_6 = arith.constant 0 : index
    %15 = vector.load %arg7[%c4, %c0_6] : memref<8x128xf32, #tpu.memory_space<vmem>>, vector<1x32xf32>
    %c5 = arith.constant 5 : index
    %c0_7 = arith.constant 0 : index
    %16 = vector.load %arg7[%c5, %c0_7] : memref<8x128xf32, #tpu.memory_space<vmem>>, vector<1x32xf32>
    %cst_8 = arith.constant dense<0.000000e+00> : vector<16xf32>
    %17 = vector.multi_reduction <add>, %14, %cst_8 [1] : vector<16x32xf32> to vector<16xf32>
    %18 = vector.shape_cast %17 : vector<16xf32> to vector<16x1xf32>
    %cst_9 = arith.constant 3.200000e+01 : f32
    %19 = vector.broadcast %cst_9 : f32 to vector<16x1xf32>
    %20 = arith.divf %18, %19 : vector<16x1xf32>
    %21 = vector.broadcast %20 : vector<16x1xf32> to vector<16x32xf32>
    %22 = arith.subf %14, %21 : vector<16x32xf32>
    %23 = arith.mulf %22, %22 : vector<16x32xf32>
    %cst_10 = arith.constant dense<0.000000e+00> : vector<16xf32>
    %24 = vector.multi_reduction <add>, %23, %cst_10 [1] : vector<16x32xf32> to vector<16xf32>
    %25 = vector.shape_cast %24 : vector<16xf32> to vector<16x1xf32>
    %cst_11 = arith.constant 3.200000e+01 : f32
    %26 = vector.broadcast %cst_11 : f32 to vector<16x1xf32>
    %27 = arith.divf %25, %26 : vector<16x1xf32>
    %28 = vector.broadcast %20 : vector<16x1xf32> to vector<16x32xf32>
    %29 = arith.subf %14, %28 : vector<16x32xf32>
    %cst_12 = arith.constant 9.99999996E-13 : f32
    %30 = vector.broadcast %cst_12 : f32 to vector<16x1xf32>
    %31 = arith.addf %27, %30 : vector<16x1xf32>
    %32 = math.rsqrt %31 : vector<16x1xf32>
    %33 = vector.broadcast %32 : vector<16x1xf32> to vector<16x32xf32>
    %34 = arith.mulf %29, %33 : vector<16x32xf32>
    %35 = vector.broadcast %15 : vector<1x32xf32> to vector<16x32xf32>
    %36 = arith.mulf %34, %35 : vector<16x32xf32>
    %37 = vector.broadcast %16 : vector<1x32xf32> to vector<16x32xf32>
    %38 = arith.addf %36, %37 : vector<16x32xf32>
    %c0_13 = arith.constant 0 : index
    %c0_14 = arith.constant 0 : index
    %39 = vector.load %arg1[%c0_13, %c0_14] : memref<16x16xf32, #tpu.memory_space<vmem>>, vector<16x16xf32>
    %c0_15 = arith.constant 0 : index
    %c0_16 = arith.constant 0 : index
    %c0_17 = arith.constant 0 : index
    %40 = vector.load %arg3[%c0_15, %c0_16, %c0_17] : memref<2x32x192xf32, #tpu.memory_space<vmem>>, vector<1x32x192xf32>
    %41 = vector.shape_cast %40 : vector<1x32x192xf32> to vector<32x192xf32>
    %c0_18 = arith.constant 0 : index
    %c0_19 = arith.constant 0 : index
    %c0_20 = arith.constant 0 : index
    %42 = vector.load %arg5[%c0_18, %c0_19, %c0_20] : memref<2x8x96xf32, #tpu.memory_space<vmem>>, vector<1x8x96xf32>
    %43 = vector.shape_cast %42 : vector<1x8x96xf32> to vector<8x96xf32>
    %44 = vector.extract_strided_slice %41 {offsets = [0, 0], sizes = [32, 96], strides = [1, 1]} : vector<32x192xf32> to vector<32x96xf32>
    %cst_21 = arith.constant dense<0.000000e+00> : vector<16x96xf32>
    %45 = tpu.matmul %38, %44, %cst_21 {dimension_numbers = #tpu.dot_dimension_numbers<[1], [0], [0], [1], [0, 0, 1, 1], [], []>} : vector<16x32xf32>, vector<32x96xf32>, vector<16x96xf32> -> vector<16x96xf32>
    %46 = vector.extract_strided_slice %43 {offsets = [0, 0], sizes = [1, 96], strides = [1, 1]} : vector<8x96xf32> to vector<1x96xf32>
    %47 = vector.broadcast %46 : vector<1x96xf32> to vector<16x96xf32>
    %48 = arith.addf %45, %47 : vector<16x96xf32>
    %cst_22 = arith.constant 0.000000e+00 : f32
    %49 = vector.broadcast %cst_22 : f32 to vector<16x32xf32>
    %50 = vector.extract_strided_slice %48 {offsets = [0, 0], sizes = [16, 8], strides = [1, 1]} : vector<16x96xf32> to vector<16x8xf32>
    %51 = vector.extract_strided_slice %48 {offsets = [0, 32], sizes = [16, 8], strides = [1, 1]} : vector<16x96xf32> to vector<16x8xf32>
    %52 = vector.extract_strided_slice %48 {offsets = [0, 64], sizes = [16, 8], strides = [1, 1]} : vector<16x96xf32> to vector<16x8xf32>
    %cst_23 = arith.constant dense<0.000000e+00> : vector<16x16xf32>
    %53 = tpu.matmul %50, %51, %cst_23 {dimension_numbers = #tpu.dot_dimension_numbers<[1], [1], [0], [0], [0, 0, 1, 0], [], []>} : vector<16x8xf32>, vector<16x8xf32>, vector<16x16xf32> -> vector<16x16xf32>
    %54 = arith.addf %53, %39 : vector<16x16xf32>
    %cst_24 = arith.constant dense<0xFF800000> : vector<16xf32>
    %55 = vector.multi_reduction <maximumf>, %54, %cst_24 [1] : vector<16x16xf32> to vector<16xf32>
    %56 = vector.shape_cast %55 : vector<16xf32> to vector<16x1xf32>
    %57 = vector.broadcast %56 : vector<16x1xf32> to vector<16x16xf32>
    %58 = arith.subf %54, %57 : vector<16x16xf32>
    %59 = math.exp %58 : vector<16x16xf32>
    %cst_25 = arith.constant dense<0.000000e+00> : vector<16xf32>
    %60 = vector.multi_reduction <add>, %59, %cst_25 [1] : vector<16x16xf32> to vector<16xf32>
    %61 = vector.shape_cast %60 : vector<16xf32> to vector<16x1xf32>
    %62 = vector.broadcast %61 : vector<16x1xf32> to vector<16x16xf32>
    %63 = arith.divf %59, %62 : vector<16x16xf32>
    %cst_26 = arith.constant dense<0.000000e+00> : vector<16x8xf32>
    %64 = tpu.matmul %63, %52, %cst_26 {dimension_numbers = #tpu.dot_dimension_numbers<[1], [0], [0], [1], [0, 0, 1, 1], [], []>} : vector<16x16xf32>, vector<16x8xf32>, vector<16x8xf32> -> vector<16x8xf32>
    %65 = vector.extract_strided_slice %41 {offsets = [0, 96], sizes = [8, 32], strides = [1, 1]} : vector<32x192xf32> to vector<8x32xf32>
    %cst_27 = arith.constant dense<0.000000e+00> : vector<16x32xf32>
    %66 = tpu.matmul %64, %65, %cst_27 {dimension_numbers = #tpu.dot_dimension_numbers<[1], [0], [0], [1], [0, 0, 1, 1], [], []>} : vector<16x8xf32>, vector<8x32xf32>, vector<16x32xf32> -> vector<16x32xf32>
    %67 = arith.addf %49, %66 : vector<16x32xf32>
    %68 = vector.extract_strided_slice %48 {offsets = [0, 8], sizes = [16, 8], strides = [1, 1]} : vector<16x96xf32> to vector<16x8xf32>
    %69 = vector.extract_strided_slice %48 {offsets = [0, 40], sizes = [16, 8], strides = [1, 1]} : vector<16x96xf32> to vector<16x8xf32>
    %70 = vector.extract_strided_slice %48 {offsets = [0, 72], sizes = [16, 8], strides = [1, 1]} : vector<16x96xf32> to vector<16x8xf32>
    %cst_28 = arith.constant dense<0.000000e+00> : vector<16x16xf32>
    %71 = tpu.matmul %68, %69, %cst_28 {dimension_numbers = #tpu.dot_dimension_numbers<[1], [1], [0], [0], [0, 0, 1, 0], [], []>} : vector<16x8xf32>, vector<16x8xf32>, vector<16x16xf32> -> vector<16x16xf32>
    %72 = arith.addf %71, %39 : vector<16x16xf32>
    %cst_29 = arith.constant dense<0xFF800000> : vector<16xf32>
    %73 = vector.multi_reduction <maximumf>, %72, %cst_29 [1] : vector<16x16xf32> to vector<16xf32>
    %74 = vector.shape_cast %73 : vector<16xf32> to vector<16x1xf32>
    %75 = vector.broadcast %74 : vector<16x1xf32> to vector<16x16xf32>
    %76 = arith.subf %72, %75 : vector<16x16xf32>
    %77 = math.exp %76 : vector<16x16xf32>
    %cst_30 = arith.constant dense<0.000000e+00> : vector<16xf32>
    %78 = vector.multi_reduction <add>, %77, %cst_30 [1] : vector<16x16xf32> to vector<16xf32>
    %79 = vector.shape_cast %78 : vector<16xf32> to vector<16x1xf32>
    %80 = vector.broadcast %79 : vector<16x1xf32> to vector<16x16xf32>
    %81 = arith.divf %77, %80 : vector<16x16xf32>
    %cst_31 = arith.constant dense<0.000000e+00> : vector<16x8xf32>
    %82 = tpu.matmul %81, %70, %cst_31 {dimension_numbers = #tpu.dot_dimension_numbers<[1], [0], [0], [1], [0, 0, 1, 1], [], []>} : vector<16x16xf32>, vector<16x8xf32>, vector<16x8xf32> -> vector<16x8xf32>
    %83 = vector.extract_strided_slice %41 {offsets = [8, 96], sizes = [8, 32], strides = [1, 1]} : vector<32x192xf32> to vector<8x32xf32>
    %cst_32 = arith.constant dense<0.000000e+00> : vector<16x32xf32>
    %84 = tpu.matmul %82, %83, %cst_32 {dimension_numbers = #tpu.dot_dimension_numbers<[1], [0], [0], [1], [0, 0, 1, 1], [], []>} : vector<16x8xf32>, vector<8x32xf32>, vector<16x32xf32> -> vector<16x32xf32>
    %85 = arith.addf %67, %84 : vector<16x32xf32>
    %86 = vector.extract_strided_slice %48 {offsets = [0, 16], sizes = [16, 8], strides = [1, 1]} : vector<16x96xf32> to vector<16x8xf32>
    %87 = vector.extract_strided_slice %48 {offsets = [0, 48], sizes = [16, 8], strides = [1, 1]} : vector<16x96xf32> to vector<16x8xf32>
    %88 = vector.extract_strided_slice %48 {offsets = [0, 80], sizes = [16, 8], strides = [1, 1]} : vector<16x96xf32> to vector<16x8xf32>
    %cst_33 = arith.constant dense<0.000000e+00> : vector<16x16xf32>
    %89 = tpu.matmul %86, %87, %cst_33 {dimension_numbers = #tpu.dot_dimension_numbers<[1], [1], [0], [0], [0, 0, 1, 0], [], []>} : vector<16x8xf32>, vector<16x8xf32>, vector<16x16xf32> -> vector<16x16xf32>
    %90 = arith.addf %89, %39 : vector<16x16xf32>
    %cst_34 = arith.constant dense<0xFF800000> : vector<16xf32>
    %91 = vector.multi_reduction <maximumf>, %90, %cst_34 [1] : vector<16x16xf32> to vector<16xf32>
    %92 = vector.shape_cast %91 : vector<16xf32> to vector<16x1xf32>
    %93 = vector.broadcast %92 : vector<16x1xf32> to vector<16x16xf32>
    %94 = arith.subf %90, %93 : vector<16x16xf32>
    %95 = math.exp %94 : vector<16x16xf32>
    %cst_35 = arith.constant dense<0.000000e+00> : vector<16xf32>
    %96 = vector.multi_reduction <add>, %95, %cst_35 [1] : vector<16x16xf32> to vector<16xf32>
    %97 = vector.shape_cast %96 : vector<16xf32> to vector<16x1xf32>
    %98 = vector.broadcast %97 : vector<16x1xf32> to vector<16x16xf32>
    %99 = arith.divf %95, %98 : vector<16x16xf32>
    %cst_36 = arith.constant dense<0.000000e+00> : vector<16x8xf32>
    %100 = tpu.matmul %99, %88, %cst_36 {dimension_numbers = #tpu.dot_dimension_numbers<[1], [0], [0], [1], [0, 0, 1, 1], [], []>} : vector<16x16xf32>, vector<16x8xf32>, vector<16x8xf32> -> vector<16x8xf32>
    %101 = vector.extract_strided_slice %41 {offsets = [16, 96], sizes = [8, 32], strides = [1, 1]} : vector<32x192xf32> to vector<8x32xf32>
    %cst_37 = arith.constant dense<0.000000e+00> : vector<16x32xf32>
    %102 = tpu.matmul %100, %101, %cst_37 {dimension_numbers = #tpu.dot_dimension_numbers<[1], [0], [0], [1], [0, 0, 1, 1], [], []>} : vector<16x8xf32>, vector<8x32xf32>, vector<16x32xf32> -> vector<16x32xf32>
    %103 = arith.addf %85, %102 : vector<16x32xf32>
    %104 = vector.extract_strided_slice %48 {offsets = [0, 24], sizes = [16, 8], strides = [1, 1]} : vector<16x96xf32> to vector<16x8xf32>
    %105 = vector.extract_strided_slice %48 {offsets = [0, 56], sizes = [16, 8], strides = [1, 1]} : vector<16x96xf32> to vector<16x8xf32>
    %106 = vector.extract_strided_slice %48 {offsets = [0, 88], sizes = [16, 8], strides = [1, 1]} : vector<16x96xf32> to vector<16x8xf32>
    %cst_38 = arith.constant dense<0.000000e+00> : vector<16x16xf32>
    %107 = tpu.matmul %104, %105, %cst_38 {dimension_numbers = #tpu.dot_dimension_numbers<[1], [1], [0], [0], [0, 0, 1, 0], [], []>} : vector<16x8xf32>, vector<16x8xf32>, vector<16x16xf32> -> vector<16x16xf32>
    %108 = arith.addf %107, %39 : vector<16x16xf32>
    %cst_39 = arith.constant dense<0xFF800000> : vector<16xf32>
    %109 = vector.multi_reduction <maximumf>, %108, %cst_39 [1] : vector<16x16xf32> to vector<16xf32>
    %110 = vector.shape_cast %109 : vector<16xf32> to vector<16x1xf32>
    %111 = vector.broadcast %110 : vector<16x1xf32> to vector<16x16xf32>
    %112 = arith.subf %108, %111 : vector<16x16xf32>
    %113 = math.exp %112 : vector<16x16xf32>
    %cst_40 = arith.constant dense<0.000000e+00> : vector<16xf32>
    %114 = vector.multi_reduction <add>, %113, %cst_40 [1] : vector<16x16xf32> to vector<16xf32>
    %115 = vector.shape_cast %114 : vector<16xf32> to vector<16x1xf32>
    %116 = vector.broadcast %115 : vector<16x1xf32> to vector<16x16xf32>
    %117 = arith.divf %113, %116 : vector<16x16xf32>
    %cst_41 = arith.constant dense<0.000000e+00> : vector<16x8xf32>
    %118 = tpu.matmul %117, %106, %cst_41 {dimension_numbers = #tpu.dot_dimension_numbers<[1], [0], [0], [1], [0, 0, 1, 1], [], []>} : vector<16x16xf32>, vector<16x8xf32>, vector<16x8xf32> -> vector<16x8xf32>
    %119 = vector.extract_strided_slice %41 {offsets = [24, 96], sizes = [8, 32], strides = [1, 1]} : vector<32x192xf32> to vector<8x32xf32>
    %cst_42 = arith.constant dense<0.000000e+00> : vector<16x32xf32>
    %120 = tpu.matmul %118, %119, %cst_42 {dimension_numbers = #tpu.dot_dimension_numbers<[1], [0], [0], [1], [0, 0, 1, 1], [], []>} : vector<16x8xf32>, vector<8x32xf32>, vector<16x32xf32> -> vector<16x32xf32>
    %121 = arith.addf %103, %120 : vector<16x32xf32>
    %122 = vector.extract_strided_slice %43 {offsets = [1, 0], sizes = [1, 32], strides = [1, 1]} : vector<8x96xf32> to vector<1x32xf32>
    %123 = vector.broadcast %122 : vector<1x32xf32> to vector<16x32xf32>
    %124 = arith.addf %121, %123 : vector<16x32xf32>
    %125 = arith.addf %124, %38 : vector<16x32xf32>
    %126 = vector.extract_strided_slice %43 {offsets = [4, 0], sizes = [1, 32], strides = [1, 1]} : vector<8x96xf32> to vector<1x32xf32>
    %127 = vector.extract_strided_slice %43 {offsets = [5, 0], sizes = [1, 32], strides = [1, 1]} : vector<8x96xf32> to vector<1x32xf32>
    %cst_43 = arith.constant dense<0.000000e+00> : vector<16xf32>
    %128 = vector.multi_reduction <add>, %125, %cst_43 [1] : vector<16x32xf32> to vector<16xf32>
    %129 = vector.shape_cast %128 : vector<16xf32> to vector<16x1xf32>
    %cst_44 = arith.constant 3.200000e+01 : f32
    %130 = vector.broadcast %cst_44 : f32 to vector<16x1xf32>
    %131 = arith.divf %129, %130 : vector<16x1xf32>
    %132 = vector.broadcast %131 : vector<16x1xf32> to vector<16x32xf32>
    %133 = arith.subf %125, %132 : vector<16x32xf32>
    %134 = arith.mulf %133, %133 : vector<16x32xf32>
    %cst_45 = arith.constant dense<0.000000e+00> : vector<16xf32>
    %135 = vector.multi_reduction <add>, %134, %cst_45 [1] : vector<16x32xf32> to vector<16xf32>
    %136 = vector.shape_cast %135 : vector<16xf32> to vector<16x1xf32>
    %cst_46 = arith.constant 3.200000e+01 : f32
    %137 = vector.broadcast %cst_46 : f32 to vector<16x1xf32>
    %138 = arith.divf %136, %137 : vector<16x1xf32>
    %139 = vector.broadcast %131 : vector<16x1xf32> to vector<16x32xf32>
    %140 = arith.subf %125, %139 : vector<16x32xf32>
    %cst_47 = arith.constant 9.99999996E-13 : f32
    %141 = vector.broadcast %cst_47 : f32 to vector<16x1xf32>
    %142 = arith.addf %138, %141 : vector<16x1xf32>
    %143 = math.rsqrt %142 : vector<16x1xf32>
    %144 = vector.broadcast %143 : vector<16x1xf32> to vector<16x32xf32>
    %145 = arith.mulf %140, %144 : vector<16x32xf32>
    %146 = vector.broadcast %126 : vector<1x32xf32> to vector<16x32xf32>
    %147 = arith.mulf %145, %146 : vector<16x32xf32>
    %148 = vector.broadcast %127 : vector<1x32xf32> to vector<16x32xf32>
    %149 = arith.addf %147, %148 : vector<16x32xf32>
    %150 = vector.extract_strided_slice %41 {offsets = [0, 128], sizes = [32, 64], strides = [1, 1]} : vector<32x192xf32> to vector<32x64xf32>
    %cst_48 = arith.constant dense<0.000000e+00> : vector<16x64xf32>
    %151 = tpu.matmul %149, %150, %cst_48 {dimension_numbers = #tpu.dot_dimension_numbers<[1], [0], [0], [1], [0, 0, 1, 1], [], []>} : vector<16x32xf32>, vector<32x64xf32>, vector<16x64xf32> -> vector<16x64xf32>
    %152 = vector.extract_strided_slice %43 {offsets = [2, 0], sizes = [1, 64], strides = [1, 1]} : vector<8x96xf32> to vector<1x64xf32>
    %153 = vector.broadcast %152 : vector<1x64xf32> to vector<16x64xf32>
    %154 = arith.addf %151, %153 : vector<16x64xf32>
    %cst_49 = arith.constant 5.000000e-01 : f32
    %155 = vector.broadcast %cst_49 : f32 to vector<16x64xf32>
    %156 = arith.mulf %155, %154 : vector<16x64xf32>
    %cst_50 = arith.constant 4.471500e-02 : f32
    %157 = vector.broadcast %cst_50 : f32 to vector<16x64xf32>
    %158 = arith.mulf %157, %154 : vector<16x64xf32>
    %159 = arith.mulf %158, %154 : vector<16x64xf32>
    %160 = arith.mulf %159, %154 : vector<16x64xf32>
    %161 = arith.addf %154, %160 : vector<16x64xf32>
    %cst_51 = arith.constant 0.797884583 : f32
    %162 = vector.broadcast %cst_51 : f32 to vector<16x64xf32>
    %163 = arith.mulf %162, %161 : vector<16x64xf32>
    %164 = math.tanh %163 : vector<16x64xf32>
    %cst_52 = arith.constant 1.000000e+00 : f32
    %165 = vector.broadcast %cst_52 : f32 to vector<16x64xf32>
    %166 = arith.addf %165, %164 : vector<16x64xf32>
    %167 = arith.mulf %156, %166 : vector<16x64xf32>
    %c0_53 = arith.constant 0 : index
    %c0_54 = arith.constant 0 : index
    %c0_55 = arith.constant 0 : index
    %168 = vector.load %arg4[%c0_53, %c0_54, %c0_55] : memref<2x64x32xf32, #tpu.memory_space<vmem>>, vector<1x64x32xf32>
    %169 = vector.shape_cast %168 : vector<1x64x32xf32> to vector<64x32xf32>
    %cst_56 = arith.constant dense<0.000000e+00> : vector<16x32xf32>
    %170 = tpu.matmul %167, %169, %cst_56 {dimension_numbers = #tpu.dot_dimension_numbers<[1], [0], [0], [1], [0, 0, 1, 1], [], []>} : vector<16x64xf32>, vector<64x32xf32>, vector<16x32xf32> -> vector<16x32xf32>
    %171 = vector.extract_strided_slice %43 {offsets = [3, 0], sizes = [1, 32], strides = [1, 1]} : vector<8x96xf32> to vector<1x32xf32>
    %172 = vector.broadcast %171 : vector<1x32xf32> to vector<16x32xf32>
    %173 = arith.addf %170, %172 : vector<16x32xf32>
    %174 = arith.addf %173, %149 : vector<16x32xf32>
    %175 = vector.extract_strided_slice %43 {offsets = [6, 0], sizes = [1, 32], strides = [1, 1]} : vector<8x96xf32> to vector<1x32xf32>
    %176 = vector.extract_strided_slice %43 {offsets = [7, 0], sizes = [1, 32], strides = [1, 1]} : vector<8x96xf32> to vector<1x32xf32>
    %cst_57 = arith.constant dense<0.000000e+00> : vector<16xf32>
    %177 = vector.multi_reduction <add>, %174, %cst_57 [1] : vector<16x32xf32> to vector<16xf32>
    %178 = vector.shape_cast %177 : vector<16xf32> to vector<16x1xf32>
    %cst_58 = arith.constant 3.200000e+01 : f32
    %179 = vector.broadcast %cst_58 : f32 to vector<16x1xf32>
    %180 = arith.divf %178, %179 : vector<16x1xf32>
    %181 = vector.broadcast %180 : vector<16x1xf32> to vector<16x32xf32>
    %182 = arith.subf %174, %181 : vector<16x32xf32>
    %183 = arith.mulf %182, %182 : vector<16x32xf32>
    %cst_59 = arith.constant dense<0.000000e+00> : vector<16xf32>
    %184 = vector.multi_reduction <add>, %183, %cst_59 [1] : vector<16x32xf32> to vector<16xf32>
    %185 = vector.shape_cast %184 : vector<16xf32> to vector<16x1xf32>
    %cst_60 = arith.constant 3.200000e+01 : f32
    %186 = vector.broadcast %cst_60 : f32 to vector<16x1xf32>
    %187 = arith.divf %185, %186 : vector<16x1xf32>
    %188 = vector.broadcast %180 : vector<16x1xf32> to vector<16x32xf32>
    %189 = arith.subf %174, %188 : vector<16x32xf32>
    %cst_61 = arith.constant 9.99999996E-13 : f32
    %190 = vector.broadcast %cst_61 : f32 to vector<16x1xf32>
    %191 = arith.addf %187, %190 : vector<16x1xf32>
    %192 = math.rsqrt %191 : vector<16x1xf32>
    %193 = vector.broadcast %192 : vector<16x1xf32> to vector<16x32xf32>
    %194 = arith.mulf %189, %193 : vector<16x32xf32>
    %195 = vector.broadcast %175 : vector<1x32xf32> to vector<16x32xf32>
    %196 = arith.mulf %194, %195 : vector<16x32xf32>
    %197 = vector.broadcast %176 : vector<1x32xf32> to vector<16x32xf32>
    %198 = arith.addf %196, %197 : vector<16x32xf32>
    %c1_62 = arith.constant 1 : index
    %c0_63 = arith.constant 0 : index
    %c0_64 = arith.constant 0 : index
    %199 = vector.load %arg3[%c1_62, %c0_63, %c0_64] : memref<2x32x192xf32, #tpu.memory_space<vmem>>, vector<1x32x192xf32>
    %200 = vector.shape_cast %199 : vector<1x32x192xf32> to vector<32x192xf32>
    %c1_65 = arith.constant 1 : index
    %c0_66 = arith.constant 0 : index
    %c0_67 = arith.constant 0 : index
    %201 = vector.load %arg5[%c1_65, %c0_66, %c0_67] : memref<2x8x96xf32, #tpu.memory_space<vmem>>, vector<1x8x96xf32>
    %202 = vector.shape_cast %201 : vector<1x8x96xf32> to vector<8x96xf32>
    %203 = vector.extract_strided_slice %200 {offsets = [0, 0], sizes = [32, 96], strides = [1, 1]} : vector<32x192xf32> to vector<32x96xf32>
    %cst_68 = arith.constant dense<0.000000e+00> : vector<16x96xf32>
    %204 = tpu.matmul %198, %203, %cst_68 {dimension_numbers = #tpu.dot_dimension_numbers<[1], [0], [0], [1], [0, 0, 1, 1], [], []>} : vector<16x32xf32>, vector<32x96xf32>, vector<16x96xf32> -> vector<16x96xf32>
    %205 = vector.extract_strided_slice %202 {offsets = [0, 0], sizes = [1, 96], strides = [1, 1]} : vector<8x96xf32> to vector<1x96xf32>
    %206 = vector.broadcast %205 : vector<1x96xf32> to vector<16x96xf32>
    %207 = arith.addf %204, %206 : vector<16x96xf32>
    %cst_69 = arith.constant 0.000000e+00 : f32
    %208 = vector.broadcast %cst_69 : f32 to vector<16x32xf32>
    %209 = vector.extract_strided_slice %207 {offsets = [0, 0], sizes = [16, 8], strides = [1, 1]} : vector<16x96xf32> to vector<16x8xf32>
    %210 = vector.extract_strided_slice %207 {offsets = [0, 32], sizes = [16, 8], strides = [1, 1]} : vector<16x96xf32> to vector<16x8xf32>
    %211 = vector.extract_strided_slice %207 {offsets = [0, 64], sizes = [16, 8], strides = [1, 1]} : vector<16x96xf32> to vector<16x8xf32>
    %cst_70 = arith.constant dense<0.000000e+00> : vector<16x16xf32>
    %212 = tpu.matmul %209, %210, %cst_70 {dimension_numbers = #tpu.dot_dimension_numbers<[1], [1], [0], [0], [0, 0, 1, 0], [], []>} : vector<16x8xf32>, vector<16x8xf32>, vector<16x16xf32> -> vector<16x16xf32>
    %213 = arith.addf %212, %39 : vector<16x16xf32>
    %cst_71 = arith.constant dense<0xFF800000> : vector<16xf32>
    %214 = vector.multi_reduction <maximumf>, %213, %cst_71 [1] : vector<16x16xf32> to vector<16xf32>
    %215 = vector.shape_cast %214 : vector<16xf32> to vector<16x1xf32>
    %216 = vector.broadcast %215 : vector<16x1xf32> to vector<16x16xf32>
    %217 = arith.subf %213, %216 : vector<16x16xf32>
    %218 = math.exp %217 : vector<16x16xf32>
    %cst_72 = arith.constant dense<0.000000e+00> : vector<16xf32>
    %219 = vector.multi_reduction <add>, %218, %cst_72 [1] : vector<16x16xf32> to vector<16xf32>
    %220 = vector.shape_cast %219 : vector<16xf32> to vector<16x1xf32>
    %221 = vector.broadcast %220 : vector<16x1xf32> to vector<16x16xf32>
    %222 = arith.divf %218, %221 : vector<16x16xf32>
    %cst_73 = arith.constant dense<0.000000e+00> : vector<16x8xf32>
    %223 = tpu.matmul %222, %211, %cst_73 {dimension_numbers = #tpu.dot_dimension_numbers<[1], [0], [0], [1], [0, 0, 1, 1], [], []>} : vector<16x16xf32>, vector<16x8xf32>, vector<16x8xf32> -> vector<16x8xf32>
    %224 = vector.extract_strided_slice %200 {offsets = [0, 96], sizes = [8, 32], strides = [1, 1]} : vector<32x192xf32> to vector<8x32xf32>
    %cst_74 = arith.constant dense<0.000000e+00> : vector<16x32xf32>
    %225 = tpu.matmul %223, %224, %cst_74 {dimension_numbers = #tpu.dot_dimension_numbers<[1], [0], [0], [1], [0, 0, 1, 1], [], []>} : vector<16x8xf32>, vector<8x32xf32>, vector<16x32xf32> -> vector<16x32xf32>
    %226 = arith.addf %208, %225 : vector<16x32xf32>
    %227 = vector.extract_strided_slice %207 {offsets = [0, 8], sizes = [16, 8], strides = [1, 1]} : vector<16x96xf32> to vector<16x8xf32>
    %228 = vector.extract_strided_slice %207 {offsets = [0, 40], sizes = [16, 8], strides = [1, 1]} : vector<16x96xf32> to vector<16x8xf32>
    %229 = vector.extract_strided_slice %207 {offsets = [0, 72], sizes = [16, 8], strides = [1, 1]} : vector<16x96xf32> to vector<16x8xf32>
    %cst_75 = arith.constant dense<0.000000e+00> : vector<16x16xf32>
    %230 = tpu.matmul %227, %228, %cst_75 {dimension_numbers = #tpu.dot_dimension_numbers<[1], [1], [0], [0], [0, 0, 1, 0], [], []>} : vector<16x8xf32>, vector<16x8xf32>, vector<16x16xf32> -> vector<16x16xf32>
    %231 = arith.addf %230, %39 : vector<16x16xf32>
    %cst_76 = arith.constant dense<0xFF800000> : vector<16xf32>
    %232 = vector.multi_reduction <maximumf>, %231, %cst_76 [1] : vector<16x16xf32> to vector<16xf32>
    %233 = vector.shape_cast %232 : vector<16xf32> to vector<16x1xf32>
    %234 = vector.broadcast %233 : vector<16x1xf32> to vector<16x16xf32>
    %235 = arith.subf %231, %234 : vector<16x16xf32>
    %236 = math.exp %235 : vector<16x16xf32>
    %cst_77 = arith.constant dense<0.000000e+00> : vector<16xf32>
    %237 = vector.multi_reduction <add>, %236, %cst_77 [1] : vector<16x16xf32> to vector<16xf32>
    %238 = vector.shape_cast %237 : vector<16xf32> to vector<16x1xf32>
    %239 = vector.broadcast %238 : vector<16x1xf32> to vector<16x16xf32>
    %240 = arith.divf %236, %239 : vector<16x16xf32>
    %cst_78 = arith.constant dense<0.000000e+00> : vector<16x8xf32>
    %241 = tpu.matmul %240, %229, %cst_78 {dimension_numbers = #tpu.dot_dimension_numbers<[1], [0], [0], [1], [0, 0, 1, 1], [], []>} : vector<16x16xf32>, vector<16x8xf32>, vector<16x8xf32> -> vector<16x8xf32>
    %242 = vector.extract_strided_slice %200 {offsets = [8, 96], sizes = [8, 32], strides = [1, 1]} : vector<32x192xf32> to vector<8x32xf32>
    %cst_79 = arith.constant dense<0.000000e+00> : vector<16x32xf32>
    %243 = tpu.matmul %241, %242, %cst_79 {dimension_numbers = #tpu.dot_dimension_numbers<[1], [0], [0], [1], [0, 0, 1, 1], [], []>} : vector<16x8xf32>, vector<8x32xf32>, vector<16x32xf32> -> vector<16x32xf32>
    %244 = arith.addf %226, %243 : vector<16x32xf32>
    %245 = vector.extract_strided_slice %207 {offsets = [0, 16], sizes = [16, 8], strides = [1, 1]} : vector<16x96xf32> to vector<16x8xf32>
    %246 = vector.extract_strided_slice %207 {offsets = [0, 48], sizes = [16, 8], strides = [1, 1]} : vector<16x96xf32> to vector<16x8xf32>
    %247 = vector.extract_strided_slice %207 {offsets = [0, 80], sizes = [16, 8], strides = [1, 1]} : vector<16x96xf32> to vector<16x8xf32>
    %cst_80 = arith.constant dense<0.000000e+00> : vector<16x16xf32>
    %248 = tpu.matmul %245, %246, %cst_80 {dimension_numbers = #tpu.dot_dimension_numbers<[1], [1], [0], [0], [0, 0, 1, 0], [], []>} : vector<16x8xf32>, vector<16x8xf32>, vector<16x16xf32> -> vector<16x16xf32>
    %249 = arith.addf %248, %39 : vector<16x16xf32>
    %cst_81 = arith.constant dense<0xFF800000> : vector<16xf32>
    %250 = vector.multi_reduction <maximumf>, %249, %cst_81 [1] : vector<16x16xf32> to vector<16xf32>
    %251 = vector.shape_cast %250 : vector<16xf32> to vector<16x1xf32>
    %252 = vector.broadcast %251 : vector<16x1xf32> to vector<16x16xf32>
    %253 = arith.subf %249, %252 : vector<16x16xf32>
    %254 = math.exp %253 : vector<16x16xf32>
    %cst_82 = arith.constant dense<0.000000e+00> : vector<16xf32>
    %255 = vector.multi_reduction <add>, %254, %cst_82 [1] : vector<16x16xf32> to vector<16xf32>
    %256 = vector.shape_cast %255 : vector<16xf32> to vector<16x1xf32>
    %257 = vector.broadcast %256 : vector<16x1xf32> to vector<16x16xf32>
    %258 = arith.divf %254, %257 : vector<16x16xf32>
    %cst_83 = arith.constant dense<0.000000e+00> : vector<16x8xf32>
    %259 = tpu.matmul %258, %247, %cst_83 {dimension_numbers = #tpu.dot_dimension_numbers<[1], [0], [0], [1], [0, 0, 1, 1], [], []>} : vector<16x16xf32>, vector<16x8xf32>, vector<16x8xf32> -> vector<16x8xf32>
    %260 = vector.extract_strided_slice %200 {offsets = [16, 96], sizes = [8, 32], strides = [1, 1]} : vector<32x192xf32> to vector<8x32xf32>
    %cst_84 = arith.constant dense<0.000000e+00> : vector<16x32xf32>
    %261 = tpu.matmul %259, %260, %cst_84 {dimension_numbers = #tpu.dot_dimension_numbers<[1], [0], [0], [1], [0, 0, 1, 1], [], []>} : vector<16x8xf32>, vector<8x32xf32>, vector<16x32xf32> -> vector<16x32xf32>
    %262 = arith.addf %244, %261 : vector<16x32xf32>
    %263 = vector.extract_strided_slice %207 {offsets = [0, 24], sizes = [16, 8], strides = [1, 1]} : vector<16x96xf32> to vector<16x8xf32>
    %264 = vector.extract_strided_slice %207 {offsets = [0, 56], sizes = [16, 8], strides = [1, 1]} : vector<16x96xf32> to vector<16x8xf32>
    %265 = vector.extract_strided_slice %207 {offsets = [0, 88], sizes = [16, 8], strides = [1, 1]} : vector<16x96xf32> to vector<16x8xf32>
    %cst_85 = arith.constant dense<0.000000e+00> : vector<16x16xf32>
    %266 = tpu.matmul %263, %264, %cst_85 {dimension_numbers = #tpu.dot_dimension_numbers<[1], [1], [0], [0], [0, 0, 1, 0], [], []>} : vector<16x8xf32>, vector<16x8xf32>, vector<16x16xf32> -> vector<16x16xf32>
    %267 = arith.addf %266, %39 : vector<16x16xf32>
    %cst_86 = arith.constant dense<0xFF800000> : vector<16xf32>
    %268 = vector.multi_reduction <maximumf>, %267, %cst_86 [1] : vector<16x16xf32> to vector<16xf32>
    %269 = vector.shape_cast %268 : vector<16xf32> to vector<16x1xf32>
    %270 = vector.broadcast %269 : vector<16x1xf32> to vector<16x16xf32>
    %271 = arith.subf %267, %270 : vector<16x16xf32>
    %272 = math.exp %271 : vector<16x16xf32>
    %cst_87 = arith.constant dense<0.000000e+00> : vector<16xf32>
    %273 = vector.multi_reduction <add>, %272, %cst_87 [1] : vector<16x16xf32> to vector<16xf32>
    %274 = vector.shape_cast %273 : vector<16xf32> to vector<16x1xf32>
    %275 = vector.broadcast %274 : vector<16x1xf32> to vector<16x16xf32>
    %276 = arith.divf %272, %275 : vector<16x16xf32>
    %cst_88 = arith.constant dense<0.000000e+00> : vector<16x8xf32>
    %277 = tpu.matmul %276, %265, %cst_88 {dimension_numbers = #tpu.dot_dimension_numbers<[1], [0], [0], [1], [0, 0, 1, 1], [], []>} : vector<16x16xf32>, vector<16x8xf32>, vector<16x8xf32> -> vector<16x8xf32>
    %278 = vector.extract_strided_slice %200 {offsets = [24, 96], sizes = [8, 32], strides = [1, 1]} : vector<32x192xf32> to vector<8x32xf32>
    %cst_89 = arith.constant dense<0.000000e+00> : vector<16x32xf32>
    %279 = tpu.matmul %277, %278, %cst_89 {dimension_numbers = #tpu.dot_dimension_numbers<[1], [0], [0], [1], [0, 0, 1, 1], [], []>} : vector<16x8xf32>, vector<8x32xf32>, vector<16x32xf32> -> vector<16x32xf32>
    %280 = arith.addf %262, %279 : vector<16x32xf32>
    %281 = vector.extract_strided_slice %202 {offsets = [1, 0], sizes = [1, 32], strides = [1, 1]} : vector<8x96xf32> to vector<1x32xf32>
    %282 = vector.broadcast %281 : vector<1x32xf32> to vector<16x32xf32>
    %283 = arith.addf %280, %282 : vector<16x32xf32>
    %284 = arith.addf %283, %198 : vector<16x32xf32>
    %285 = vector.extract_strided_slice %202 {offsets = [4, 0], sizes = [1, 32], strides = [1, 1]} : vector<8x96xf32> to vector<1x32xf32>
    %286 = vector.extract_strided_slice %202 {offsets = [5, 0], sizes = [1, 32], strides = [1, 1]} : vector<8x96xf32> to vector<1x32xf32>
    %cst_90 = arith.constant dense<0.000000e+00> : vector<16xf32>
    %287 = vector.multi_reduction <add>, %284, %cst_90 [1] : vector<16x32xf32> to vector<16xf32>
    %288 = vector.shape_cast %287 : vector<16xf32> to vector<16x1xf32>
    %cst_91 = arith.constant 3.200000e+01 : f32
    %289 = vector.broadcast %cst_91 : f32 to vector<16x1xf32>
    %290 = arith.divf %288, %289 : vector<16x1xf32>
    %291 = vector.broadcast %290 : vector<16x1xf32> to vector<16x32xf32>
    %292 = arith.subf %284, %291 : vector<16x32xf32>
    %293 = arith.mulf %292, %292 : vector<16x32xf32>
    %cst_92 = arith.constant dense<0.000000e+00> : vector<16xf32>
    %294 = vector.multi_reduction <add>, %293, %cst_92 [1] : vector<16x32xf32> to vector<16xf32>
    %295 = vector.shape_cast %294 : vector<16xf32> to vector<16x1xf32>
    %cst_93 = arith.constant 3.200000e+01 : f32
    %296 = vector.broadcast %cst_93 : f32 to vector<16x1xf32>
    %297 = arith.divf %295, %296 : vector<16x1xf32>
    %298 = vector.broadcast %290 : vector<16x1xf32> to vector<16x32xf32>
    %299 = arith.subf %284, %298 : vector<16x32xf32>
    %cst_94 = arith.constant 9.99999996E-13 : f32
    %300 = vector.broadcast %cst_94 : f32 to vector<16x1xf32>
    %301 = arith.addf %297, %300 : vector<16x1xf32>
    %302 = math.rsqrt %301 : vector<16x1xf32>
    %303 = vector.broadcast %302 : vector<16x1xf32> to vector<16x32xf32>
    %304 = arith.mulf %299, %303 : vector<16x32xf32>
    %305 = vector.broadcast %285 : vector<1x32xf32> to vector<16x32xf32>
    %306 = arith.mulf %304, %305 : vector<16x32xf32>
    %307 = vector.broadcast %286 : vector<1x32xf32> to vector<16x32xf32>
    %308 = arith.addf %306, %307 : vector<16x32xf32>
    %309 = vector.extract_strided_slice %200 {offsets = [0, 128], sizes = [32, 64], strides = [1, 1]} : vector<32x192xf32> to vector<32x64xf32>
    %cst_95 = arith.constant dense<0.000000e+00> : vector<16x64xf32>
    %310 = tpu.matmul %308, %309, %cst_95 {dimension_numbers = #tpu.dot_dimension_numbers<[1], [0], [0], [1], [0, 0, 1, 1], [], []>} : vector<16x32xf32>, vector<32x64xf32>, vector<16x64xf32> -> vector<16x64xf32>
    %311 = vector.extract_strided_slice %202 {offsets = [2, 0], sizes = [1, 64], strides = [1, 1]} : vector<8x96xf32> to vector<1x64xf32>
    %312 = vector.broadcast %311 : vector<1x64xf32> to vector<16x64xf32>
    %313 = arith.addf %310, %312 : vector<16x64xf32>
    %cst_96 = arith.constant 5.000000e-01 : f32
    %314 = vector.broadcast %cst_96 : f32 to vector<16x64xf32>
    %315 = arith.mulf %314, %313 : vector<16x64xf32>
    %cst_97 = arith.constant 4.471500e-02 : f32
    %316 = vector.broadcast %cst_97 : f32 to vector<16x64xf32>
    %317 = arith.mulf %316, %313 : vector<16x64xf32>
    %318 = arith.mulf %317, %313 : vector<16x64xf32>
    %319 = arith.mulf %318, %313 : vector<16x64xf32>
    %320 = arith.addf %313, %319 : vector<16x64xf32>
    %cst_98 = arith.constant 0.797884583 : f32
    %321 = vector.broadcast %cst_98 : f32 to vector<16x64xf32>
    %322 = arith.mulf %321, %320 : vector<16x64xf32>
    %323 = math.tanh %322 : vector<16x64xf32>
    %cst_99 = arith.constant 1.000000e+00 : f32
    %324 = vector.broadcast %cst_99 : f32 to vector<16x64xf32>
    %325 = arith.addf %324, %323 : vector<16x64xf32>
    %326 = arith.mulf %315, %325 : vector<16x64xf32>
    %c1_100 = arith.constant 1 : index
    %c0_101 = arith.constant 0 : index
    %c0_102 = arith.constant 0 : index
    %327 = vector.load %arg4[%c1_100, %c0_101, %c0_102] : memref<2x64x32xf32, #tpu.memory_space<vmem>>, vector<1x64x32xf32>
    %328 = vector.shape_cast %327 : vector<1x64x32xf32> to vector<64x32xf32>
    %cst_103 = arith.constant dense<0.000000e+00> : vector<16x32xf32>
    %329 = tpu.matmul %326, %328, %cst_103 {dimension_numbers = #tpu.dot_dimension_numbers<[1], [0], [0], [1], [0, 0, 1, 1], [], []>} : vector<16x64xf32>, vector<64x32xf32>, vector<16x32xf32> -> vector<16x32xf32>
    %330 = vector.extract_strided_slice %202 {offsets = [3, 0], sizes = [1, 32], strides = [1, 1]} : vector<8x96xf32> to vector<1x32xf32>
    %331 = vector.broadcast %330 : vector<1x32xf32> to vector<16x32xf32>
    %332 = arith.addf %329, %331 : vector<16x32xf32>
    %333 = arith.addf %332, %308 : vector<16x32xf32>
    %334 = vector.extract_strided_slice %202 {offsets = [6, 0], sizes = [1, 32], strides = [1, 1]} : vector<8x96xf32> to vector<1x32xf32>
    %335 = vector.extract_strided_slice %202 {offsets = [7, 0], sizes = [1, 32], strides = [1, 1]} : vector<8x96xf32> to vector<1x32xf32>
    %cst_104 = arith.constant dense<0.000000e+00> : vector<16xf32>
    %336 = vector.multi_reduction <add>, %333, %cst_104 [1] : vector<16x32xf32> to vector<16xf32>
    %337 = vector.shape_cast %336 : vector<16xf32> to vector<16x1xf32>
    %cst_105 = arith.constant 3.200000e+01 : f32
    %338 = vector.broadcast %cst_105 : f32 to vector<16x1xf32>
    %339 = arith.divf %337, %338 : vector<16x1xf32>
    %340 = vector.broadcast %339 : vector<16x1xf32> to vector<16x32xf32>
    %341 = arith.subf %333, %340 : vector<16x32xf32>
    %342 = arith.mulf %341, %341 : vector<16x32xf32>
    %cst_106 = arith.constant dense<0.000000e+00> : vector<16xf32>
    %343 = vector.multi_reduction <add>, %342, %cst_106 [1] : vector<16x32xf32> to vector<16xf32>
    %344 = vector.shape_cast %343 : vector<16xf32> to vector<16x1xf32>
    %cst_107 = arith.constant 3.200000e+01 : f32
    %345 = vector.broadcast %cst_107 : f32 to vector<16x1xf32>
    %346 = arith.divf %344, %345 : vector<16x1xf32>
    %347 = vector.broadcast %339 : vector<16x1xf32> to vector<16x32xf32>
    %348 = arith.subf %333, %347 : vector<16x32xf32>
    %cst_108 = arith.constant 9.99999996E-13 : f32
    %349 = vector.broadcast %cst_108 : f32 to vector<16x1xf32>
    %350 = arith.addf %346, %349 : vector<16x1xf32>
    %351 = math.rsqrt %350 : vector<16x1xf32>
    %352 = vector.broadcast %351 : vector<16x1xf32> to vector<16x32xf32>
    %353 = arith.mulf %348, %352 : vector<16x32xf32>
    %354 = vector.broadcast %334 : vector<1x32xf32> to vector<16x32xf32>
    %355 = arith.mulf %353, %354 : vector<16x32xf32>
    %356 = vector.broadcast %335 : vector<1x32xf32> to vector<16x32xf32>
    %357 = arith.addf %355, %356 : vector<16x32xf32>
    %c0_109 = arith.constant 0 : index
    %c128_110 = arith.constant 128 : index
    %358 = vector.load %arg6[%c0_109, %c128_110] : memref<32x160xf32, #tpu.memory_space<vmem>>, vector<32x32xf32>
    %cst_111 = arith.constant dense<0.000000e+00> : vector<16x32xf32>
    %359 = tpu.matmul %357, %358, %cst_111 {dimension_numbers = #tpu.dot_dimension_numbers<[1], [0], [0], [1], [0, 0, 1, 1], [], []>} : vector<16x32xf32>, vector<32x32xf32>, vector<16x32xf32> -> vector<16x32xf32>
    %c1_112 = arith.constant 1 : index
    %c0_113 = arith.constant 0 : index
    %360 = vector.load %arg7[%c1_112, %c0_113] : memref<8x128xf32, #tpu.memory_space<vmem>>, vector<1x32xf32>
    %361 = vector.broadcast %360 : vector<1x32xf32> to vector<16x32xf32>
    %362 = arith.addf %359, %361 : vector<16x32xf32>
    %cst_114 = arith.constant 5.000000e-01 : f32
    %363 = vector.broadcast %cst_114 : f32 to vector<16x32xf32>
    %364 = arith.mulf %363, %362 : vector<16x32xf32>
    %cst_115 = arith.constant 4.471500e-02 : f32
    %365 = vector.broadcast %cst_115 : f32 to vector<16x32xf32>
    %366 = arith.mulf %365, %362 : vector<16x32xf32>
    %367 = arith.mulf %366, %362 : vector<16x32xf32>
    %368 = arith.mulf %367, %362 : vector<16x32xf32>
    %369 = arith.addf %362, %368 : vector<16x32xf32>
    %cst_116 = arith.constant 0.797884583 : f32
    %370 = vector.broadcast %cst_116 : f32 to vector<16x32xf32>
    %371 = arith.mulf %370, %369 : vector<16x32xf32>
    %372 = math.tanh %371 : vector<16x32xf32>
    %cst_117 = arith.constant 1.000000e+00 : f32
    %373 = vector.broadcast %cst_117 : f32 to vector<16x32xf32>
    %374 = arith.addf %373, %372 : vector<16x32xf32>
    %375 = arith.mulf %364, %374 : vector<16x32xf32>
    %c2 = arith.constant 2 : index
    %c0_118 = arith.constant 0 : index
    %376 = vector.load %arg7[%c2, %c0_118] : memref<8x128xf32, #tpu.memory_space<vmem>>, vector<1x32xf32>
    %c3 = arith.constant 3 : index
    %c0_119 = arith.constant 0 : index
    %377 = vector.load %arg7[%c3, %c0_119] : memref<8x128xf32, #tpu.memory_space<vmem>>, vector<1x32xf32>
    %cst_120 = arith.constant dense<0.000000e+00> : vector<16xf32>
    %378 = vector.multi_reduction <add>, %375, %cst_120 [1] : vector<16x32xf32> to vector<16xf32>
    %379 = vector.shape_cast %378 : vector<16xf32> to vector<16x1xf32>
    %cst_121 = arith.constant 3.200000e+01 : f32
    %380 = vector.broadcast %cst_121 : f32 to vector<16x1xf32>
    %381 = arith.divf %379, %380 : vector<16x1xf32>
    %382 = vector.broadcast %381 : vector<16x1xf32> to vector<16x32xf32>
    %383 = arith.subf %375, %382 : vector<16x32xf32>
    %384 = arith.mulf %383, %383 : vector<16x32xf32>
    %cst_122 = arith.constant dense<0.000000e+00> : vector<16xf32>
    %385 = vector.multi_reduction <add>, %384, %cst_122 [1] : vector<16x32xf32> to vector<16xf32>
    %386 = vector.shape_cast %385 : vector<16xf32> to vector<16x1xf32>
    %cst_123 = arith.constant 3.200000e+01 : f32
    %387 = vector.broadcast %cst_123 : f32 to vector<16x1xf32>
    %388 = arith.divf %386, %387 : vector<16x1xf32>
    %389 = vector.broadcast %381 : vector<16x1xf32> to vector<16x32xf32>
    %390 = arith.subf %375, %389 : vector<16x32xf32>
    %cst_124 = arith.constant 9.99999996E-13 : f32
    %391 = vector.broadcast %cst_124 : f32 to vector<16x1xf32>
    %392 = arith.addf %388, %391 : vector<16x1xf32>
    %393 = math.rsqrt %392 : vector<16x1xf32>
    %394 = vector.broadcast %393 : vector<16x1xf32> to vector<16x32xf32>
    %395 = arith.mulf %390, %394 : vector<16x32xf32>
    %396 = vector.broadcast %376 : vector<1x32xf32> to vector<16x32xf32>
    %397 = arith.mulf %395, %396 : vector<16x32xf32>
    %398 = vector.broadcast %377 : vector<1x32xf32> to vector<16x32xf32>
    %399 = arith.addf %397, %398 : vector<16x32xf32>
    %c0_125 = arith.constant 0 : index
    %c0_126 = arith.constant 0 : index
    %400 = vector.load %arg6[%c0_125, %c0_126] : memref<32x160xf32, #tpu.memory_space<vmem>>, vector<32x128xf32>
    %cst_127 = arith.constant dense<0.000000e+00> : vector<16x128xf32>
    %401 = tpu.matmul %399, %400, %cst_127 {dimension_numbers = #tpu.dot_dimension_numbers<[1], [0], [0], [1], [0, 0, 1, 1], [], []>} : vector<16x32xf32>, vector<32x128xf32>, vector<16x128xf32> -> vector<16x128xf32>
    %c0_128 = arith.constant 0 : index
    %c0_129 = arith.constant 0 : index
    %402 = vector.load %arg7[%c0_128, %c0_129] : memref<8x128xf32, #tpu.memory_space<vmem>>, vector<1x128xf32>
    %403 = vector.broadcast %402 : vector<1x128xf32> to vector<16x128xf32>
    %404 = arith.addf %401, %403 : vector<16x128xf32>
    %c0_130 = arith.constant 0 : index
    %c0_131 = arith.constant 0 : index
    %405 = vector.load %arg8[%c0_130, %c0_131] : memref<16x128xf32, #tpu.memory_space<vmem>>, vector<16x128xf32>
    tpu.vector_store %arg8[%c0_130, %c0_131], %404 {strides = array<i32>} : memref<16x128xf32, #tpu.memory_space<vmem>>, vector<16x128xf32>,
    %cst_132 = arith.constant dense<0xFF800000> : vector<16xf32>
    %406 = vector.multi_reduction <maximumf>, %404, %cst_132 [1] : vector<16x128xf32> to vector<16xf32>
    %407 = vector.shape_cast %406 : vector<16xf32> to vector<16x1xf32>
    %408 = vector.broadcast %407 : vector<16x1xf32> to vector<16x128xf32>
    %409 = arith.subf %404, %408 : vector<16x128xf32>
    %410 = math.exp %409 : vector<16x128xf32>
    %cst_133 = arith.constant dense<0.000000e+00> : vector<16xf32>
    %411 = vector.multi_reduction <add>, %410, %cst_133 [1] : vector<16x128xf32> to vector<16xf32>
    %412 = vector.shape_cast %411 : vector<16xf32> to vector<16x1xf32>
    %413 = math.log %412 : vector<16x1xf32>
    %414 = vector.broadcast %413 : vector<16x1xf32> to vector<16x128xf32>
    %415 = arith.subf %409, %414 : vector<16x128xf32>
    %416 = vector.broadcast %1 : vector<16x1xi32> to vector<16x128xi32>
    %417 = arith.cmpi eq, %2, %416 : vector<16x128xi32>
    %418 = arith.extui %417 : vector<16x128xi1> to vector<16x128xi32>
    %419 = arith.sitofp %418 : vector<16x128xi32> to vector<16x128xf32>
    %420 = arith.mulf %419, %415 : vector<16x128xf32>
    %cst_134 = arith.constant dense<0.000000e+00> : vector<16xf32>
    %421 = vector.multi_reduction <add>, %420, %cst_134 [1] : vector<16x128xf32> to vector<16xf32>
    %422 = vector.shape_cast %421 : vector<16xf32> to vector<16x1xf32>
    %cst_135 = arith.constant 0.000000e+00 : f32
    %423 = vector.broadcast %cst_135 : f32 to vector<16x1xf32>
    %424 = arith.subf %423, %422 : vector<16x1xf32>
    %c0_i32 = arith.constant 0 : i32
    %425 = vector.broadcast %c0_i32 : i32 to vector<16x1xi32>
    %426 = arith.cmpi sge, %1, %425 : vector<16x1xi32>
    %427 = arith.extui %426 : vector<16x1xi1> to vector<16x1xi32>
    %428 = arith.sitofp %427 : vector<16x1xi32> to vector<16x1xf32>
    %429 = arith.mulf %424, %428 : vector<16x1xf32>
    %cst_136 = arith.constant dense<0.000000e+00> : vector<1xf32>
    %430 = vector.multi_reduction <add>, %429, %cst_136 [0] : vector<16x1xf32> to vector<1xf32>
    %431 = vector.shape_cast %430 : vector<1xf32> to vector<1x1xf32>
    %cst_137 = arith.constant dense<0.000000e+00> : vector<1xf32>
    %432 = vector.multi_reduction <add>, %428, %cst_137 [0] : vector<16x1xf32> to vector<1xf32>
    %433 = vector.shape_cast %432 : vector<1xf32> to vector<1x1xf32>
    %434 = arith.divf %431, %433 : vector<1x1xf32>
    %c0_138 = arith.constant 0 : index
    %c0_139 = arith.constant 0 : index
    %435 = vector.load %arg9[%c0_138, %c0_139] : memref<1x1xf32, #tpu.memory_space<vmem>>, vector<1x1xf32>
    tpu.vector_store %arg9[%c0_138, %c0_139], %434 {strides = array<i32>} : memref<1x1xf32, #tpu.memory_space<vmem>>, vector<1x1xf32>,
    return
  }
}

</mosaic_0001>

<llo_original>
// kernel: bert_mlm_forward.1
$region0: #{bert_mlm_forward.1}
  #allocation0 [shape = 'u32[]', space=smem, size = 0x4, offset = 0x4, fixed_abs, tag = 'smem constant byte address 0x4 - core index']
  #allocation1 [shape = 'u32[72,128]{1,0:T(1,128)}', space=vmem, size = 0x9000, scoped, tag = 'internal scratch']
  %s0 = inlined_call_operand.vmem [shape: s32[16,2], index: 0, kind: input, shape index: {}]
  %s1 = inlined_call_operand.vmem [shape: f32[16,16], index: 1, kind: input, shape index: {}]
  %s2 = inlined_call_operand.vmem [shape: f32[146,32], index: 2, kind: input, shape index: {}]
  %s3 = inlined_call_operand.vmem [shape: f32[2,32,192], index: 3, kind: input, shape index: {}]
  %s4 = inlined_call_operand.vmem [shape: f32[2,64,32], index: 4, kind: input, shape index: {}]
  %s5 = inlined_call_operand.vmem [shape: f32[2,8,96], index: 5, kind: input, shape index: {}]
  %s6 = inlined_call_operand.vmem [shape: f32[32,160], index: 6, kind: input, shape index: {}]
  %s7 = inlined_call_operand.vmem [shape: f32[8,128], index: 7, kind: input, shape index: {}]
  %s8 = inlined_call_operand.hbm [shape: f32[16,128], index: 8, kind: output, shape index: {0}]
  %s9 = inlined_call_operand.hbm [shape: f32[1,1], index: 9, kind: output, shape index: {1}]
  %10 = xla_tuple %s8, %s9
  %s11 = sld [smem:[#allocation0]]
  $region50: #{bert_mlm_forward.1} parent=0
    _
  %s13 = ssub.s32 1, %s11
  %s14 = scalar_select 0, %s13, %s11
  $region1: #{bert_mlm_forward.1} parent=0
    #allocation2 [shape = 'u8[8192]{0}', space=vmem, size = 0x2000, scoped, tag = 'output window, operand 0, single buffered']
    #allocation3 [shape = 's32[1]{0}', space=sflag, size = 0x4, scoped, tag = 'scoped memory for bert_mlm_forward.1']
    #allocation4 [shape = 'u8[512]{0}', space=vmem, size = 0x400, scoped, tag = 'output window, operand 1, single buffered']
    #allocation5 [shape = 's32[1]{0}', space=sflag, size = 0x4, scoped, tag = 'scoped memory for bert_mlm_forward.1']
    %15 = vsyncpa [#allocation3], 0
    %16 = vsyncpa [#allocation5], 0
    // Predicated region
    $region2: #{bert_mlm_forward.1} parent=1 // pred_check
      _
    $region3: #{bert_mlm_forward.1} parent=1 // pred_check_branch
      %18 = sbr.rel (0) target = $region5
    $region4: #{bert_mlm_forward.1} parent=1 // pred_region
      _
    $region5: #{bert_mlm_forward.1} parent=1 // pred_fallthru
      _
    // Predicated region
    $region6: #{bert_mlm_forward.1} parent=1 // pred_check
      _
    $region7: #{bert_mlm_forward.1} parent=1 // pred_check_branch
      %20 = sbr.rel (0) target = $region9
    $region8: #{bert_mlm_forward.1} parent=1 // pred_region
      _
    $region9: #{bert_mlm_forward.1} parent=1 // pred_fallthru
      _
    // Predicated region
    $region10: #{bert_mlm_forward.1} parent=1 // pred_check
      _
    $region11: #{bert_mlm_forward.1} parent=1 // pred_check_branch
      %22 = sbr.rel (0) target = $region13
    $region12: #{bert_mlm_forward.1} parent=1 // pred_region
      _
    $region13: #{bert_mlm_forward.1} parent=1 // pred_fallthru
      _
    // Predicated region
    $region14: #{bert_mlm_forward.1} parent=1 // pred_check
      _
    $region15: #{bert_mlm_forward.1} parent=1 // pred_check_branch
      %24 = sbr.rel (0) target = $region17
    $region16: #{bert_mlm_forward.1} parent=1 // pred_region
      _
    $region17: #{bert_mlm_forward.1} parent=1 // pred_fallthru
      _
    // Predicated region
    $region18: #{bert_mlm_forward.1} parent=1 // pred_check
      _
    $region19: #{bert_mlm_forward.1} parent=1 // pred_check_branch
      %26 = sbr.rel (0) target = $region21
    $region20: #{bert_mlm_forward.1} parent=1 // pred_region
      _
    $region21: #{bert_mlm_forward.1} parent=1 // pred_fallthru
      _
    // Predicated region
    $region22: #{bert_mlm_forward.1} parent=1 // pred_check
      _
    $region23: #{bert_mlm_forward.1} parent=1 // pred_check_branch
      %28 = sbr.rel (0) target = $region25
    $region24: #{bert_mlm_forward.1} parent=1 // pred_region
      _
    $region25: #{bert_mlm_forward.1} parent=1 // pred_fallthru
      _
    // Predicated region
    $region26: #{bert_mlm_forward.1} parent=1 // pred_check
      _
    $region27: #{bert_mlm_forward.1} parent=1 // pred_check_branch
      %30 = sbr.rel (0) target = $region29
    $region28: #{bert_mlm_forward.1} parent=1 // pred_region
      _
    $region29: #{bert_mlm_forward.1} parent=1 // pred_fallthru
      _
    // Predicated region
    $region30: #{bert_mlm_forward.1} parent=1 // pred_check
      _
    $region31: #{bert_mlm_forward.1} parent=1 // pred_check_branch
      %32 = sbr.rel (0) target = $region33
    $region32: #{bert_mlm_forward.1} parent=1 // pred_region
      _
    $region33: #{bert_mlm_forward.1} parent=1 // pred_fallthru
      _
    %v33 = vld [vmem:[%s0] sm:$0xff]
    %v34 = vld [vmem:[%s0 + $0x8] sm:$0xff]
    %v35 = vlaneseq
    %v36 = vand.u32 %v35, 127
    %37 = vset.pattern.permute.xlu0 0
    %38 = vperm.xlu0 %37, %v33
    %v39 = vpop.permute.xlu0 %38
    %40 = vset.pattern.permute.xlu0 0
    %41 = vperm.xlu0 %40, %v34
    %v42 = vpop.permute.xlu0 %41
    %vm43 = vcmp.eq.s32.totalorder %v36, %v39
    %vm44 = vcmp.eq.s32.totalorder %v36, %v42
    %v45 = vsel %vm43, 1, 0
    %v46 = vsel %vm44, 1, 0
    %v47 = vcvt.s32.f32 %v45
    %v48 = vcvt.s32.f32 %v46
    %v49 = vld [vmem:[%s2] sm:$0xff]
    %v50 = vld [vmem:[%s2 + $0x8] sm:$0xff]
    %v51 = vld [vmem:[%s2 + $0x10] sm:$0xff]
    %v52 = vld [vmem:[%s2 + $0x18] sm:$0xff]
    %v53 = vld [vmem:[%s2 + $0x20] sm:$0xff]
    %v54 = vld [vmem:[%s2 + $0x28] sm:$0xff]
    %v55 = vld [vmem:[%s2 + $0x30] sm:$0xff]
    %v56 = vld [vmem:[%s2 + $0x38] sm:$0xff]
    %v57 = vld [vmem:[%s2 + $0x40] sm:$0xff]
    %v58 = vld [vmem:[%s2 + $0x48] sm:$0xff]
    %v59 = vld [vmem:[%s2 + $0x50] sm:$0xff]
    %v60 = vld [vmem:[%s2 + $0x58] sm:$0xff]
    %v61 = vld [vmem:[%s2 + $0x60] sm:$0xff]
    %v62 = vld [vmem:[%s2 + $0x68] sm:$0xff]
    %v63 = vld [vmem:[%s2 + $0x70] sm:$0xff]
    %v64 = vld [vmem:[%s2 + $0x78] sm:$0xff]
    %v65 = vld [vmem:[%s2 + $0x80] sm:$0xff]
    %v66 = vld [vmem:[%s2 + $0x90] sm:$0x1]
    %v67 = vperm.slane %v66, 0
    %v68 = vadd.f32 %v65, %v67
    %69 = vmatpush.msra.mxu0 %v64
    %70 = vmatpush.msra.mxu0 %v63
    %71 = vmatpush.msra.mxu0 %v62
    %72 = vmatpush.msra.mxu0 %v61
    %73 = vmatpush.msra.mxu0 %v60
    %74 = vmatpush.msra.mxu0 %v59
    %75 = vmatpush.msra.mxu0 %v58
    %76 = vmatpush.msra.mxu0 %v57
    %77 = vmatpush.msra.mxu0 %v56
    %78 = vmatpush.msra.mxu0 %v55
    %79 = vmatpush.msra.mxu0 %v54
    %80 = vmatpush.msra.mxu0 %v53
    %81 = vmatpush.msra.mxu0 %v52
    %82 = vmatpush.msra.mxu0 %v51
    %83 = vmatpush.msra.mxu0 %v50
    %84 = vmatpush.msra.mxu0 %v49
    %85 = vmatmul.f32.gmra.mxu0 %v47
    %v86 = vpop.f32.mrf.mxu0
    %v87 = vadd.f32 %v68, %v86
    %88 = vmatmul.f32.gmra.mxu0 %v48
    %v89 = vpop.f32.mrf.mxu0
    %v90 = vadd.f32 %v68, %v89
    %91 = vdwg.mxu0
    %v92 = vld [vmem:[%s7 + $0x4] sm:$0x1]
    %v93 = vld [vmem:[%s7 + $0x5] sm:$0x1]
    %vm94 = vcmask 261120
    %v95 = vsel %vm94, %v87, 0.0
    %96 = vadd.xlane.f32.xlu0 %v95
    %v97 = vpop.xlane.xlu0 %96
    %v98 = vsel %vm94, %v90, 0.0
    %99 = vadd.xlane.f32.xlu0 %v98
    %v100 = vpop.xlane.xlu0 %99
    %v101 = vrcp.pop 32.0
    %v102 = vmul.f32 32.0, %v101
    %v103 = vsub.f32 1.0, %v102
    %v104 = vmul.f32 %v101, %v103
    %v105 = vadd.f32 %v101, %v104
    %vm106 = vweird.f32 %v101
    %v107 = vsel %vm106, %v101, %v105
    %v108 = vmul.f32 %v97, %v107
    %v109 = vmul.f32 %v100, %v107
    %v110 = vsub.f32 %v87, %v108
    %v111 = vsub.f32 %v90, %v109
    %v112 = vmul.f32 %v110, %v110
    %v113 = vmul.f32 %v111, %v111
    %v114 = vsel %vm94, %v112, 0.0
    %115 = vadd.xlane.f32.xlu0 %v114
    %v116 = vpop.xlane.xlu0 %115
    %v117 = vsel %vm94, %v113, 0.0
    %118 = vadd.xlane.f32.xlu0 %v117
    %v119 = vpop.xlane.xlu0 %118
    %v120 = vmul.f32 %v116, %v107
    %v121 = vmul.f32 %v119, %v107
    %v122 = vadd.f32 %v120, 1e-12
    %v123 = vadd.f32 %v121, 1e-12
    %v124 = vrsqrt.pop %v122
    %v125 = vmul.f32 %v124, %v122
    %v126 = vmul.f32 %v125, %v124
    %v127 = vmul.f32 0.5, %v126
    %v128 = vsub.f32 1.5, %v127
    %v129 = vmul.f32 %v124, %v128
    %vm130 = vweird.f32 %v122
    %vm131 = vweird.f32 %v124
    %vm132 = vmor %vm130, %vm131
    %v133 = vsel %vm132, %v124, %v129
    %v134 = vrsqrt.pop %v123
    %v135 = vmul.f32 %v134, %v123
    %v136 = vmul.f32 %v135, %v134
    %v137 = vmul.f32 0.5, %v136
    %v138 = vsub.f32 1.5, %v137
    %v139 = vmul.f32 %v134, %v138
    %vm140 = vweird.f32 %v123
    %vm141 = vweird.f32 %v134
    %vm142 = vmor %vm140, %vm141
    %v143 = vsel %vm142, %v134, %v139
    %v144 = vmul.f32 %v110, %v133
    %v145 = vmul.f32 %v111, %v143
    %v146 = vperm.slane %v92, 0
    %v147 = vmul.f32 %v144, %v146
    %v148 = vmul.f32 %v145, %v146
    %v149 = vperm.slane %v93, 0
    %v150 = vadd.f32 %v147, %v149
    %v151 = vadd.f32 %v148, %v149
    %v152 = vld [vmem:[%s1] sm:$0xff]
    %v153 = vld [vmem:[%s1 + $0x8] sm:$0xff]
    %v154 = vld [vmem:[%s3] sm:$0xff]
    %v155 = vld [vmem:[%s3 + $0x8] sm:$0xff]
    %v156 = vld [vmem:[%s3 + $0x10] sm:$0xff]
    %v157 = vld [vmem:[%s3 + $0x18] sm:$0xff]
    %v158 = vld [vmem:[%s3 + $0x20] sm:$0xff]
    %v159 = vld [vmem:[%s3 + $0x28] sm:$0xff]
    %v160 = vld [vmem:[%s3 + $0x30] sm:$0xff]
    %v161 = vld [vmem:[%s3 + $0x38] sm:$0xff]
    %v162 = vld [vmem:[%s5] sm:$0xff]
    %v163 = vperm.slane %v162, 0
    %v165 = vsel %vm94, %v150, 0
    %v168 = vsel %vm94, %v151, 0
    %170 = vmatpush.msra.mxu0 0.0
    %171 = vmatpush.msra.mxu0 0.0
    %172 = vmatpush.msra.mxu0 0.0
    %173 = vmatpush.msra.mxu0 0.0
    %174 = vmatpush.msra.mxu0 0.0
    %175 = vmatpush.msra.mxu0 0.0
    %176 = vmatpush.msra.mxu0 0.0
    %177 = vmatpush.msra.mxu0 0.0
    %178 = vmatpush.msra.mxu0 0.0
    %179 = vmatpush.msra.mxu0 0.0
    %180 = vmatpush.msra.mxu0 0.0
    %181 = vmatpush.msra.mxu0 0.0
    %182 = vmatpush.msra.mxu0 %v160
    %183 = vmatpush.msra.mxu0 %v158
    %184 = vmatpush.msra.mxu0 %v156
    %185 = vmatpush.msra.mxu0 %v154
    %186 = vmatmul.f32.gmra.mxu0 %v165
    %v187 = vpop.f32.mrf.mxu0
    %v188 = vadd.f32 %v163, %v187
    %189 = vmatmul.f32.gmra.mxu0 %v168
    %v190 = vpop.f32.mrf.mxu0
    %v191 = vadd.f32 %v163, %v190
    %192 = vdwg.mxu0
    %195 = vrot.lane.b32.xlu0 %v188, 96
    %v196 = vpop.permute.xlu0 %195
    %197 = vrot.lane.b32.xlu0 %v191, 96
    %v198 = vpop.permute.xlu0 %197
    %vm199 = vcmask 64512
    %v200 = vsel %vm199, %v188, 0
    %v202 = vsel %vm199, %v191, 0
    %v204 = vsel %vm199, %v196, 0
    %v206 = vsel %vm199, %v198, 0
    %208 = vmatpush.xpose.msra.mxu0 0.0
    %209 = vmatpush.xpose.msra.mxu0 0.0
    %210 = vmatpush.xpose.msra.mxu0 0.0
    %211 = vmatpush.xpose.msra.mxu0 0.0
    %212 = vmatpush.xpose.msra.mxu0 0.0
    %213 = vmatpush.xpose.msra.mxu0 0.0
    %214 = vmatpush.xpose.msra.mxu0 0.0
    %215 = vmatpush.xpose.msra.mxu0 0.0
    %216 = vmatpush.xpose.msra.mxu0 0.0
    %217 = vmatpush.xpose.msra.mxu0 0.0
    %218 = vmatpush.xpose.msra.mxu0 0.0
    %219 = vmatpush.xpose.msra.mxu0 0.0
    %220 = vmatpush.xpose.msra.mxu0 0.0
    %221 = vmatpush.xpose.msra.mxu0 0.0
    %222 = vmatpush.xpose.msra.mxu0 %v206
    %223 = vmatpush.xpose.msra.mxu0 %v204
    %224 = vmatmul.f32.gmra.mxu0 %v200
    %v225 = vpop.f32.mrf.mxu0
    %v226 = vadd.f32 %v152, %v225
    %227 = vmatmul.f32.gmra.mxu0 %v202
    %v228 = vpop.f32.mrf.mxu0
    %v229 = vadd.f32 %v153, %v228
    %230 = vdwg.mxu0
    %vm231 = vcmask 130048
    %v232 = vsel %vm231, %v226, -inf
    %233 = vmax.xlane.f32.xlu0 %v232
    %v234 = vpop.xlane.xlu0 %233
    %v235 = vsel %vm231, %v229, -inf
    %236 = vmax.xlane.f32.xlu0 %v235
    %v237 = vpop.xlane.xlu0 %236
    %v238 = vsub.f32 %v226, %v234
    %v239 = vsub.f32 %v229, %v237
    %v240 = vmul.f32 %v238, 1.442695
    %v241 = vpow.pop %v240
    %v242 = vmul.f32 %v239, 1.442695
    %v243 = vpow.pop %v242
    %v244 = vsel %vm231, %v241, 0.0
    %245 = vadd.xlane.f32.xlu0 %v244
    %v246 = vpop.xlane.xlu0 %245
    %v247 = vsel %vm231, %v243, 0.0
    %248 = vadd.xlane.f32.xlu0 %v247
    %v249 = vpop.xlane.xlu0 %248
    %v250 = vrcp.pop %v246
    %v251 = vmul.f32 %v246, %v250
    %v252 = vsub.f32 1.0, %v251
    %v253 = vmul.f32 %v250, %v252
    %v254 = vadd.f32 %v250, %v253
    %vm255 = vweird.f32 %v246
    %vm256 = vweird.f32 %v250
    %vm257 = vmor %vm255, %vm256
    %v258 = vsel %vm257, %v250, %v254
    %v259 = vand.u32 2147483647, %v246
    %vm260 = vcmp.eq.f32.partialorder %v259, 8.507059e+37
    %v261 = vand.u32 %v246, 2147483648
    %v262 = vor.u32 1.1754944e-38, %v261
    %v263 = vsel %vm260, %v262, %v258
    %v264 = vmul.f32 %v241, %v263
    %v265 = vrcp.pop %v249
    %v266 = vmul.f32 %v249, %v265
    %v267 = vsub.f32 1.0, %v266
    %v268 = vmul.f32 %v265, %v267
    %v269 = vadd.f32 %v265, %v268
    %vm270 = vweird.f32 %v249
    %vm271 = vweird.f32 %v265
    %vm272 = vmor %vm270, %vm271
    %v273 = vsel %vm272, %v265, %v269
    %v274 = vand.u32 2147483647, %v249
    %vm275 = vcmp.eq.f32.partialorder %v274, 8.507059e+37
    %v276 = vand.u32 %v249, 2147483648
    %v277 = vor.u32 1.1754944e-38, %v276
    %v278 = vsel %vm275, %v277, %v273
    %v279 = vmul.f32 %v243, %v278
    %280 = vrot.lane.b32.xlu0 %v188, 64
    %v281 = vpop.permute.xlu0 %280
    %282 = vrot.lane.b32.xlu0 %v191, 64
    %v283 = vpop.permute.xlu0 %282
    %v287 = vsel %vm231, %v264, 0
    %v290 = vsel %vm231, %v279, 0
    %292 = vmatpush.msra.mxu0 0.0
    %293 = vmatpush.msra.mxu0 0.0
    %294 = vmatpush.msra.mxu0 0.0
    %295 = vmatpush.msra.mxu0 0.0
    %296 = vmatpush.msra.mxu0 0.0
    %297 = vmatpush.msra.mxu0 0.0
    %298 = vmatpush.msra.mxu0 0.0
    %299 = vmatpush.msra.mxu0 0.0
    %300 = vmatpush.msra.mxu0 0.0
    %301 = vmatpush.msra.mxu0 0.0
    %302 = vmatpush.msra.mxu0 0.0
    %303 = vmatpush.msra.mxu0 0.0
    %304 = vmatpush.msra.mxu0 0.0
    %305 = vmatpush.msra.mxu0 0.0
    %306 = vmatpush.msra.mxu0 %v283
    %307 = vmatpush.msra.mxu0 %v281
    %308 = vmatmul.f32.gmra.mxu0 %v287
    %v309 = vpop.f32.mrf.mxu0
    %v310 = vadd.f32 0.0, %v309
    %311 = vmatmul.f32.gmra.mxu0 %v290
    %v312 = vpop.f32.mrf.mxu0
    %v313 = vadd.f32 0.0, %v312
    %314 = vdwg.mxu0
    %315 = vrot.lane.b32.xlu0 %v188, 120
    %v316 = vpop.permute.xlu0 %315
    %317 = vrot.lane.b32.xlu0 %v191, 120
    %v318 = vpop.permute.xlu0 %317
    %319 = vrot.lane.b32.xlu0 %v188, 88
    %v320 = vpop.permute.xlu0 %319
    %321 = vrot.lane.b32.xlu0 %v191, 88
    %v322 = vpop.permute.xlu0 %321
    %v323 = vsel %vm199, %v316, 0
    %v325 = vsel %vm199, %v318, 0
    %v327 = vsel %vm199, %v320, 0
    %v329 = vsel %vm199, %v322, 0
    %331 = vmatpush.xpose.msra.mxu0 0.0
    %332 = vmatpush.xpose.msra.mxu0 0.0
    %333 = vmatpush.xpose.msra.mxu0 0.0
    %334 = vmatpush.xpose.msra.mxu0 0.0
    %335 = vmatpush.xpose.msra.mxu0 0.0
    %336 = vmatpush.xpose.msra.mxu0 0.0
    %337 = vmatpush.xpose.msra.mxu0 0.0
    %338 = vmatpush.xpose.msra.mxu0 0.0
    %339 = vmatpush.xpose.msra.mxu0 0.0
    %340 = vmatpush.xpose.msra.mxu0 0.0
    %341 = vmatpush.xpose.msra.mxu0 0.0
    %342 = vmatpush.xpose.msra.mxu0 0.0
    %343 = vmatpush.xpose.msra.mxu0 0.0
    %344 = vmatpush.xpose.msra.mxu0 0.0
    %345 = vmatpush.xpose.msra.mxu0 %v329
    %346 = vmatpush.xpose.msra.mxu0 %v327
    %347 = vmatmul.f32.gmra.mxu0 %v323
    %v348 = vpop.f32.mrf.mxu0
    %v349 = vadd.f32 %v152, %v348
    %350 = vmatmul.f32.gmra.mxu0 %v325
    %v351 = vpop.f32.mrf.mxu0
    %v352 = vadd.f32 %v153, %v351
    %353 = vdwg.mxu0
    %v354 = vsel %vm231, %v349, -inf
    %355 = vmax.xlane.f32.xlu0 %v354
    %v356 = vpop.xlane.xlu0 %355
    %v357 = vsel %vm231, %v352, -inf
    %358 = vmax.xlane.f32.xlu0 %v357
    %v359 = vpop.xlane.xlu0 %358
    %v360 = vsub.f32 %v349, %v356
    %v361 = vsub.f32 %v352, %v359
    %v362 = vmul.f32 %v360, 1.442695
    %v363 = vpow.pop %v362
    %v364 = vmul.f32 %v361, 1.442695
    %v365 = vpow.pop %v364
    %v366 = vsel %vm231, %v363, 0.0
    %367 = vadd.xlane.f32.xlu0 %v366
    %v368 = vpop.xlane.xlu0 %367
    %v369 = vsel %vm231, %v365, 0.0
    %370 = vadd.xlane.f32.xlu0 %v369
    %v371 = vpop.xlane.xlu0 %370
    %v372 = vrcp.pop %v368
    %v373 = vmul.f32 %v368, %v372
    %v374 = vsub.f32 1.0, %v373
    %v375 = vmul.f32 %v372, %v374
    %v376 = vadd.f32 %v372, %v375
    %vm377 = vweird.f32 %v368
    %vm378 = vweird.f32 %v372
    %vm379 = vmor %vm377, %vm378
    %v380 = vsel %vm379, %v372, %v376
    %v381 = vand.u32 2147483647, %v368
    %vm382 = vcmp.eq.f32.partialorder %v381, 8.507059e+37
    %v383 = vand.u32 %v368, 2147483648
    %v384 = vor.u32 1.1754944e-38, %v383
    %v385 = vsel %vm382, %v384, %v380
    %v386 = vmul.f32 %v363, %v385
    %v387 = vrcp.pop %v371
    %v388 = vmul.f32 %v371, %v387
    %v389 = vsub.f32 1.0, %v388
    %v390 = vmul.f32 %v387, %v389
    %v391 = vadd.f32 %v387, %v390
    %vm392 = vweird.f32 %v371
    %vm393 = vweird.f32 %v387
    %vm394 = vmor %vm392, %vm393
    %v395 = vsel %vm394, %v387, %v391
    %v396 = vand.u32 2147483647, %v371
    %vm397 = vcmp.eq.f32.partialorder %v396, 8.507059e+37
    %v398 = vand.u32 %v371, 2147483648
    %v399 = vor.u32 1.1754944e-38, %v398
    %v400 = vsel %vm397, %v399, %v395
    %v401 = vmul.f32 %v365, %v400
    %402 = vrot.lane.b32.xlu0 %v188, 56
    %v403 = vpop.permute.xlu0 %402
    %404 = vrot.lane.b32.xlu0 %v191, 56
    %v405 = vpop.permute.xlu0 %404
    %v409 = vsel %vm231, %v386, 0
    %v412 = vsel %vm231, %v401, 0
    %414 = vmatpush.msra.mxu0 0.0
    %415 = vmatpush.msra.mxu0 0.0
    %416 = vmatpush.msra.mxu0 0.0
    %417 = vmatpush.msra.mxu0 0.0
    %418 = vmatpush.msra.mxu0 0.0
    %419 = vmatpush.msra.mxu0 0.0
    %420 = vmatpush.msra.mxu0 0.0
    %421 = vmatpush.msra.mxu0 0.0
    %422 = vmatpush.msra.mxu0 0.0
    %423 = vmatpush.msra.mxu0 0.0
    %424 = vmatpush.msra.mxu0 0.0
    %425 = vmatpush.msra.mxu0 0.0
    %426 = vmatpush.msra.mxu0 0.0
    %427 = vmatpush.msra.mxu0 0.0
    %428 = vmatpush.msra.mxu0 %v405
    %429 = vmatpush.msra.mxu0 %v403
    %430 = vmatmul.f32.gmra.mxu0 %v409
    %v431 = vpop.f32.mrf.mxu0
    %v432 = vadd.f32 0.0, %v431
    %433 = vmatmul.f32.gmra.mxu0 %v412
    %v434 = vpop.f32.mrf.mxu0
    %v435 = vadd.f32 0.0, %v434
    %436 = vdwg.mxu0
    %438 = vrot.lane.b32.xlu0 %v156, 32
    %v439 = vpop.permute.xlu0 %438
    %v442 = vsel %vm199, %v432, 0
    %v445 = vsel %vm199, %v435, 0
    %447 = vmatpush.msra.mxu0 0.0
    %448 = vmatpush.msra.mxu0 0.0
    %449 = vmatpush.msra.mxu0 0.0
    %450 = vmatpush.msra.mxu0 0.0
    %451 = vmatpush.msra.mxu0 0.0
    %452 = vmatpush.msra.mxu0 0.0
    %453 = vmatpush.msra.mxu0 0.0
    %454 = vmatpush.msra.mxu0 0.0
    %455 = vmatpush.msra.mxu0 0.0
    %456 = vmatpush.msra.mxu0 0.0
    %457 = vmatpush.msra.mxu0 0.0
    %458 = vmatpush.msra.mxu0 0.0
    %459 = vmatpush.msra.mxu0 0.0
    %460 = vmatpush.msra.mxu0 0.0
    %461 = vmatpush.msra.mxu0 0.0
    %462 = vmatpush.msra.mxu0 %v439
    %463 = vmatmul.f32.gmra.mxu0 %v442
    %v464 = vpop.f32.mrf.mxu0
    %v465 = vadd.f32 0.0, %v464
    %466 = vmatmul.f32.gmra.mxu0 %v445
    %v467 = vpop.f32.mrf.mxu0
    %v468 = vadd.f32 0.0, %v467
    %469 = vdwg.mxu0
    %471 = vrot.lane.b32.xlu0 %v154, 32
    %v472 = vpop.permute.xlu0 %471
    %v475 = vsel %vm199, %v310, 0
    %v478 = vsel %vm199, %v313, 0
    %480 = vmatpush.msra.mxu0 0.0
    %481 = vmatpush.msra.mxu0 0.0
    %482 = vmatpush.msra.mxu0 0.0
    %483 = vmatpush.msra.mxu0 0.0
    %484 = vmatpush.msra.mxu0 0.0
    %485 = vmatpush.msra.mxu0 0.0
    %486 = vmatpush.msra.mxu0 0.0
    %487 = vmatpush.msra.mxu0 0.0
    %488 = vmatpush.msra.mxu0 0.0
    %489 = vmatpush.msra.mxu0 0.0
    %490 = vmatpush.msra.mxu0 0.0
    %491 = vmatpush.msra.mxu0 0.0
    %492 = vmatpush.msra.mxu0 0.0
    %493 = vmatpush.msra.mxu0 0.0
    %494 = vmatpush.msra.mxu0 0.0
    %495 = vmatpush.msra.mxu0 %v472
    %496 = vmatmul.f32.gmra.mxu0 %v475
    %v497 = vpop.f32.mrf.mxu0
    %v498 = vadd.f32 %v465, %v497
    %499 = vmatmul.f32.gmra.mxu0 %v478
    %v500 = vpop.f32.mrf.mxu0
    %v501 = vadd.f32 %v468, %v500
    %502 = vdwg.mxu0
    %503 = vrot.lane.b32.xlu0 %v188, 112
    %v504 = vpop.permute.xlu0 %503
    %505 = vrot.lane.b32.xlu0 %v191, 112
    %v506 = vpop.permute.xlu0 %505
    %507 = vrot.lane.b32.xlu0 %v188, 80
    %v508 = vpop.permute.xlu0 %507
    %509 = vrot.lane.b32.xlu0 %v191, 80
    %v510 = vpop.permute.xlu0 %509
    %v511 = vsel %vm199, %v504, 0
    %v513 = vsel %vm199, %v506, 0
    %v515 = vsel %vm199, %v508, 0
    %v517 = vsel %vm199, %v510, 0
    %519 = vmatpush.xpose.msra.mxu0 0.0
    %520 = vmatpush.xpose.msra.mxu0 0.0
    %521 = vmatpush.xpose.msra.mxu0 0.0
    %522 = vmatpush.xpose.msra.mxu0 0.0
    %523 = vmatpush.xpose.msra.mxu0 0.0
    %524 = vmatpush.xpose.msra.mxu0 0.0
    %525 = vmatpush.xpose.msra.mxu0 0.0
    %526 = vmatpush.xpose.msra.mxu0 0.0
    %527 = vmatpush.xpose.msra.mxu0 0.0
    %528 = vmatpush.xpose.msra.mxu0 0.0
    %529 = vmatpush.xpose.msra.mxu0 0.0
    %530 = vmatpush.xpose.msra.mxu0 0.0
    %531 = vmatpush.xpose.msra.mxu0 0.0
    %532 = vmatpush.xpose.msra.mxu0 0.0
    %533 = vmatpush.xpose.msra.mxu0 %v517
    %534 = vmatpush.xpose.msra.mxu0 %v515
    %535 = vmatmul.f32.gmra.mxu0 %v511
    %v536 = vpop.f32.mrf.mxu0
    %v537 = vadd.f32 %v152, %v536
    %538 = vmatmul.f32.gmra.mxu0 %v513
    %v539 = vpop.f32.mrf.mxu0
    %v540 = vadd.f32 %v153, %v539
    %541 = vdwg.mxu0
    %v542 = vsel %vm231, %v537, -inf
    %543 = vmax.xlane.f32.xlu0 %v542
    %v544 = vpop.xlane.xlu0 %543
    %v545 = vsel %vm231, %v540, -inf
    %546 = vmax.xlane.f32.xlu0 %v545
    %v547 = vpop.xlane.xlu0 %546
    %v548 = vsub.f32 %v537, %v544
    %v549 = vsub.f32 %v540, %v547
    %v550 = vmul.f32 %v548, 1.442695
    %v551 = vpow.pop %v550
    %v552 = vmul.f32 %v549, 1.442695
    %v553 = vpow.pop %v552
    %v554 = vsel %vm231, %v551, 0.0
    %555 = vadd.xlane.f32.xlu0 %v554
    %v556 = vpop.xlane.xlu0 %555
    %v557 = vsel %vm231, %v553, 0.0
    %558 = vadd.xlane.f32.xlu0 %v557
    %v559 = vpop.xlane.xlu0 %558
    %v560 = vrcp.pop %v556
    %v561 = vmul.f32 %v556, %v560
    %v562 = vsub.f32 1.0, %v561
    %v563 = vmul.f32 %v560, %v562
    %v564 = vadd.f32 %v560, %v563
    %vm565 = vweird.f32 %v556
    %vm566 = vweird.f32 %v560
    %vm567 = vmor %vm565, %vm566
    %v568 = vsel %vm567, %v560, %v564
    %v569 = vand.u32 2147483647, %v556
    %vm570 = vcmp.eq.f32.partialorder %v569, 8.507059e+37
    %v571 = vand.u32 %v556, 2147483648
    %v572 = vor.u32 1.1754944e-38, %v571
    %v573 = vsel %vm570, %v572, %v568
    %v574 = vmul.f32 %v551, %v573
    %v575 = vrcp.pop %v559
    %v576 = vmul.f32 %v559, %v575
    %v577 = vsub.f32 1.0, %v576
    %v578 = vmul.f32 %v575, %v577
    %v579 = vadd.f32 %v575, %v578
    %vm580 = vweird.f32 %v559
    %vm581 = vweird.f32 %v575
    %vm582 = vmor %vm580, %vm581
    %v583 = vsel %vm582, %v575, %v579
    %v584 = vand.u32 2147483647, %v559
    %vm585 = vcmp.eq.f32.partialorder %v584, 8.507059e+37
    %v586 = vand.u32 %v559, 2147483648
    %v587 = vor.u32 1.1754944e-38, %v586
    %v588 = vsel %vm585, %v587, %v583
    %v589 = vmul.f32 %v553, %v588
    %590 = vrot.lane.b32.xlu0 %v188, 48
    %v591 = vpop.permute.xlu0 %590
    %592 = vrot.lane.b32.xlu0 %v191, 48
    %v593 = vpop.permute.xlu0 %592
    %v597 = vsel %vm231, %v574, 0
    %v600 = vsel %vm231, %v589, 0
    %602 = vmatpush.msra.mxu0 0.0
    %603 = vmatpush.msra.mxu0 0.0
    %604 = vmatpush.msra.mxu0 0.0
    %605 = vmatpush.msra.mxu0 0.0
    %606 = vmatpush.msra.mxu0 0.0
    %607 = vmatpush.msra.mxu0 0.0
    %608 = vmatpush.msra.mxu0 0.0
    %609 = vmatpush.msra.mxu0 0.0
    %610 = vmatpush.msra.mxu0 0.0
    %611 = vmatpush.msra.mxu0 0.0
    %612 = vmatpush.msra.mxu0 0.0
    %613 = vmatpush.msra.mxu0 0.0
    %614 = vmatpush.msra.mxu0 0.0
    %615 = vmatpush.msra.mxu0 0.0
    %616 = vmatpush.msra.mxu0 %v593
    %617 = vmatpush.msra.mxu0 %v591
    %618 = vmatmul.f32.gmra.mxu0 %v597
    %v619 = vpop.f32.mrf.mxu0
    %v620 = vadd.f32 0.0, %v619
    %621 = vmatmul.f32.gmra.mxu0 %v600
    %v622 = vpop.f32.mrf.mxu0
    %v623 = vadd.f32 0.0, %v622
    %624 = vdwg.mxu0
    %626 = vrot.lane.b32.xlu0 %v158, 32
    %v627 = vpop.permute.xlu0 %626
    %v630 = vsel %vm199, %v620, 0
    %v633 = vsel %vm199, %v623, 0
    %635 = vmatpush.msra.mxu0 0.0
    %636 = vmatpush.msra.mxu0 0.0
    %637 = vmatpush.msra.mxu0 0.0
    %638 = vmatpush.msra.mxu0 0.0
    %639 = vmatpush.msra.mxu0 0.0
    %640 = vmatpush.msra.mxu0 0.0
    %641 = vmatpush.msra.mxu0 0.0
    %642 = vmatpush.msra.mxu0 0.0
    %643 = vmatpush.msra.mxu0 0.0
    %644 = vmatpush.msra.mxu0 0.0
    %645 = vmatpush.msra.mxu0 0.0
    %646 = vmatpush.msra.mxu0 0.0
    %647 = vmatpush.msra.mxu0 0.0
    %648 = vmatpush.msra.mxu0 0.0
    %649 = vmatpush.msra.mxu0 0.0
    %650 = vmatpush.msra.mxu0 %v627
    %651 = vmatmul.f32.gmra.mxu0 %v630
    %v652 = vpop.f32.mrf.mxu0
    %v653 = vadd.f32 0.0, %v652
    %654 = vmatmul.f32.gmra.mxu0 %v633
    %v655 = vpop.f32.mrf.mxu0
    %v656 = vadd.f32 0.0, %v655
    %657 = vdwg.mxu0
    %v658 = vadd.f32 %v498, %v653
    %v659 = vadd.f32 %v501, %v656
    %660 = vrot.lane.b32.xlu0 %v188, 104
    %v661 = vpop.permute.xlu0 %660
    %662 = vrot.lane.b32.xlu0 %v191, 104
    %v663 = vpop.permute.xlu0 %662
    %664 = vrot.lane.b32.xlu0 %v188, 72
    %v665 = vpop.permute.xlu0 %664
    %666 = vrot.lane.b32.xlu0 %v191, 72
    %v667 = vpop.permute.xlu0 %666
    %v668 = vsel %vm199, %v661, 0
    %v670 = vsel %vm199, %v663, 0
    %v672 = vsel %vm199, %v665, 0
    %v674 = vsel %vm199, %v667, 0
    %676 = vmatpush.xpose.msra.mxu0 0.0
    %677 = vmatpush.xpose.msra.mxu0 0.0
    %678 = vmatpush.xpose.msra.mxu0 0.0
    %679 = vmatpush.xpose.msra.mxu0 0.0
    %680 = vmatpush.xpose.msra.mxu0 0.0
    %681 = vmatpush.xpose.msra.mxu0 0.0
    %682 = vmatpush.xpose.msra.mxu0 0.0
    %683 = vmatpush.xpose.msra.mxu0 0.0
    %684 = vmatpush.xpose.msra.mxu0 0.0
    %685 = vmatpush.xpose.msra.mxu0 0.0
    %686 = vmatpush.xpose.msra.mxu0 0.0
    %687 = vmatpush.xpose.msra.mxu0 0.0
    %688 = vmatpush.xpose.msra.mxu0 0.0
    %689 = vmatpush.xpose.msra.mxu0 0.0
    %690 = vmatpush.xpose.msra.mxu0 %v674
    %691 = vmatpush.xpose.msra.mxu0 %v672
    %692 = vmatmul.f32.gmra.mxu0 %v668
    %v693 = vpop.f32.mrf.mxu0
    %v694 = vadd.f32 %v152, %v693
    %695 = vmatmul.f32.gmra.mxu0 %v670
    %v696 = vpop.f32.mrf.mxu0
    %v697 = vadd.f32 %v153, %v696
    %698 = vdwg.mxu0
    %v699 = vsel %vm231, %v694, -inf
    %700 = vmax.xlane.f32.xlu0 %v699
    %v701 = vpop.xlane.xlu0 %700
    %v702 = vsel %vm231, %v697, -inf
    %703 = vmax.xlane.f32.xlu0 %v702
    %v704 = vpop.xlane.xlu0 %703
    %v705 = vsub.f32 %v694, %v701
    %v706 = vsub.f32 %v697, %v704
    %v707 = vmul.f32 %v705, 1.442695
    %v708 = vpow.pop %v707
    %v709 = vmul.f32 %v706, 1.442695
    %v710 = vpow.pop %v709
    %v711 = vsel %vm231, %v708, 0.0
    %712 = vadd.xlane.f32.xlu0 %v711
    %v713 = vpop.xlane.xlu0 %712
    %v714 = vsel %vm231, %v710, 0.0
    %715 = vadd.xlane.f32.xlu0 %v714
    %v716 = vpop.xlane.xlu0 %715
    %v717 = vrcp.pop %v713
    %v718 = vmul.f32 %v713, %v717
    %v719 = vsub.f32 1.0, %v718
    %v720 = vmul.f32 %v717, %v719
    %v721 = vadd.f32 %v717, %v720
    %vm722 = vweird.f32 %v713
    %vm723 = vweird.f32 %v717
    %vm724 = vmor %vm722, %vm723
    %v725 = vsel %vm724, %v717, %v721
    %v726 = vand.u32 2147483647, %v713
    %vm727 = vcmp.eq.f32.partialorder %v726, 8.507059e+37
    %v728 = vand.u32 %v713, 2147483648
    %v729 = vor.u32 1.1754944e-38, %v728
    %v730 = vsel %vm727, %v729, %v725
    %v731 = vmul.f32 %v708, %v730
    %v732 = vrcp.pop %v716
    %v733 = vmul.f32 %v716, %v732
    %v734 = vsub.f32 1.0, %v733
    %v735 = vmul.f32 %v732, %v734
    %v736 = vadd.f32 %v732, %v735
    %vm737 = vweird.f32 %v716
    %vm738 = vweird.f32 %v732
    %vm739 = vmor %vm737, %vm738
    %v740 = vsel %vm739, %v732, %v736
    %v741 = vand.u32 2147483647, %v716
    %vm742 = vcmp.eq.f32.partialorder %v741, 8.507059e+37
    %v743 = vand.u32 %v716, 2147483648
    %v744 = vor.u32 1.1754944e-38, %v743
    %v745 = vsel %vm742, %v744, %v740
    %v746 = vmul.f32 %v710, %v745
    %747 = vrot.lane.b32.xlu0 %v188, 40
    %v748 = vpop.permute.xlu0 %747
    %749 = vrot.lane.b32.xlu0 %v191, 40
    %v750 = vpop.permute.xlu0 %749
    %v754 = vsel %vm231, %v731, 0
    %v757 = vsel %vm231, %v746, 0
    %759 = vmatpush.msra.mxu0 0.0
    %760 = vmatpush.msra.mxu0 0.0
    %761 = vmatpush.msra.mxu0 0.0
    %762 = vmatpush.msra.mxu0 0.0
    %763 = vmatpush.msra.mxu0 0.0
    %764 = vmatpush.msra.mxu0 0.0
    %765 = vmatpush.msra.mxu0 0.0
    %766 = vmatpush.msra.mxu0 0.0
    %767 = vmatpush.msra.mxu0 0.0
    %768 = vmatpush.msra.mxu0 0.0
    %769 = vmatpush.msra.mxu0 0.0
    %770 = vmatpush.msra.mxu0 0.0
    %771 = vmatpush.msra.mxu0 0.0
    %772 = vmatpush.msra.mxu0 0.0
    %773 = vmatpush.msra.mxu0 %v750
    %774 = vmatpush.msra.mxu0 %v748
    %775 = vmatmul.f32.gmra.mxu0 %v754
    %v776 = vpop.f32.mrf.mxu0
    %v777 = vadd.f32 0.0, %v776
    %778 = vmatmul.f32.gmra.mxu0 %v757
    %v779 = vpop.f32.mrf.mxu0
    %v780 = vadd.f32 0.0, %v779
    %781 = vdwg.mxu0
    %783 = vrot.lane.b32.xlu0 %v160, 32
    %v784 = vpop.permute.xlu0 %783
    %v787 = vsel %vm199, %v777, 0
    %v790 = vsel %vm199, %v780, 0
    %792 = vmatpush.msra.mxu0 0.0
    %793 = vmatpush.msra.mxu0 0.0
    %794 = vmatpush.msra.mxu0 0.0
    %795 = vmatpush.msra.mxu0 0.0
    %796 = vmatpush.msra.mxu0 0.0
    %797 = vmatpush.msra.mxu0 0.0
    %798 = vmatpush.msra.mxu0 0.0
    %799 = vmatpush.msra.mxu0 0.0
    %800 = vmatpush.msra.mxu0 0.0
    %801 = vmatpush.msra.mxu0 0.0
    %802 = vmatpush.msra.mxu0 0.0
    %803 = vmatpush.msra.mxu0 0.0
    %804 = vmatpush.msra.mxu0 0.0
    %805 = vmatpush.msra.mxu0 0.0
    %806 = vmatpush.msra.mxu0 0.0
    %807 = vmatpush.msra.mxu0 %v784
    %808 = vmatmul.f32.gmra.mxu0 %v787
    %v809 = vpop.f32.mrf.mxu0
    %v810 = vadd.f32 0.0, %v809
    %811 = vmatmul.f32.gmra.mxu0 %v790
    %v812 = vpop.f32.mrf.mxu0
    %v813 = vadd.f32 0.0, %v812
    %814 = vdwg.mxu0
    %v815 = vadd.f32 %v658, %v810
    %v816 = vadd.f32 %v659, %v813
    %v817 = vperm.slane %v162, 1
    %v818 = vadd.f32 %v815, %v817
    %v819 = vadd.f32 %v816, %v817
    %v820 = vadd.f32 %v818, %v150
    %v821 = vadd.f32 %v819, %v151
    %v822 = vsel %vm94, %v820, 0.0
    %823 = vadd.xlane.f32.xlu0 %v822
    %v824 = vpop.xlane.xlu0 %823
    %v825 = vsel %vm94, %v821, 0.0
    %826 = vadd.xlane.f32.xlu0 %v825
    %v827 = vpop.xlane.xlu0 %826
    %v828 = vmul.f32 %v824, %v107
    %v829 = vmul.f32 %v827, %v107
    %v830 = vsub.f32 %v820, %v828
    %v831 = vsub.f32 %v821, %v829
    %v832 = vmul.f32 %v830, %v830
    %v833 = vmul.f32 %v831, %v831
    %v834 = vsel %vm94, %v832, 0.0
    %835 = vadd.xlane.f32.xlu0 %v834
    %v836 = vpop.xlane.xlu0 %835
    %v837 = vsel %vm94, %v833, 0.0
    %838 = vadd.xlane.f32.xlu0 %v837
    %v839 = vpop.xlane.xlu0 %838
    %v840 = vmul.f32 %v836, %v107
    %v841 = vmul.f32 %v839, %v107
    %v842 = vadd.f32 %v840, 1e-12
    %v843 = vadd.f32 %v841, 1e-12
    %v844 = vrsqrt.pop %v842
    %v845 = vmul.f32 %v844, %v842
    %v846 = vmul.f32 %v845, %v844
    %v847 = vmul.f32 0.5, %v846
    %v848 = vsub.f32 1.5, %v847
    %v849 = vmul.f32 %v844, %v848
    %vm850 = vweird.f32 %v842
    %vm851 = vweird.f32 %v844
    %vm852 = vmor %vm850, %vm851
    %v853 = vsel %vm852, %v844, %v849
    %v854 = vrsqrt.pop %v843
    %v855 = vmul.f32 %v854, %v843
    %v856 = vmul.f32 %v855, %v854
    %v857 = vmul.f32 0.5, %v856
    %v858 = vsub.f32 1.5, %v857
    %v859 = vmul.f32 %v854, %v858
    %vm860 = vweird.f32 %v843
    %vm861 = vweird.f32 %v854
    %vm862 = vmor %vm860, %vm861
    %v863 = vsel %vm862, %v854, %v859
    %v864 = vmul.f32 %v830, %v853
    %v865 = vmul.f32 %v831, %v863
    %v866 = vperm.slane %v162, 4
    %v867 = vmul.f32 %v864, %v866
    %v868 = vmul.f32 %v865, %v866
    %v869 = vperm.slane %v162, 5
    %v870 = vadd.f32 %v867, %v869
    %v871 = vadd.f32 %v868, %v869
    %v872 = vperm.slane %v162, 2
    %v874 = vsel %vm94, %v870, 0
    %v877 = vsel %vm94, %v871, 0
    %879 = vmatpush.msra.mxu0 0.0
    %880 = vmatpush.msra.mxu0 0.0
    %881 = vmatpush.msra.mxu0 0.0
    %882 = vmatpush.msra.mxu0 0.0
    %883 = vmatpush.msra.mxu0 0.0
    %884 = vmatpush.msra.mxu0 0.0
    %885 = vmatpush.msra.mxu0 0.0
    %886 = vmatpush.msra.mxu0 0.0
    %887 = vmatpush.msra.mxu0 0.0
    %888 = vmatpush.msra.mxu0 0.0
    %889 = vmatpush.msra.mxu0 0.0
    %890 = vmatpush.msra.mxu0 0.0
    %891 = vmatpush.msra.mxu0 %v161
    %892 = vmatpush.msra.mxu0 %v159
    %893 = vmatpush.msra.mxu0 %v157
    %894 = vmatpush.msra.mxu0 %v155
    %895 = vmatmul.f32.gmra.mxu0 %v874
    %v896 = vpop.f32.mrf.mxu0
    %v897 = vadd.f32 %v872, %v896
    %898 = vmatmul.f32.gmra.mxu0 %v877
    %v899 = vpop.f32.mrf.mxu0
    %v900 = vadd.f32 %v872, %v899
    %901 = vdwg.mxu0
    %v902 = vmul.f32 %v897, 0.5
    %v903 = vmul.f32 %v900, 0.5
    %v904 = vmul.f32 %v897, 0.044715
    %v905 = vmul.f32 %v900, 0.044715
    %v906 = vmul.f32 %v904, %v897
    %v907 = vmul.f32 %v905, %v900
    %v908 = vmul.f32 %v906, %v897
    %v909 = vmul.f32 %v907, %v900
    %v910 = vadd.f32 %v897, %v908
    %v911 = vadd.f32 %v900, %v909
    %v912 = vmul.f32 %v910, 0.7978846
    %v913 = vmul.f32 %v911, 0.7978846
    %v914 = vtanh.pop %v912
    %v915 = vtanh.pop %v913
    %v916 = vadd.f32 %v914, 1.0
    %v917 = vadd.f32 %v915, 1.0
    %v918 = vmul.f32 %v902, %v916
    %v919 = vmul.f32 %v903, %v917
    %v920 = vld [vmem:[%s4] sm:$0xff]
    %v921 = vld [vmem:[%s4 + $0x8] sm:$0xff]
    %v922 = vld [vmem:[%s4 + $0x10] sm:$0xff]
    %v923 = vld [vmem:[%s4 + $0x18] sm:$0xff]
    %v924 = vld [vmem:[%s4 + $0x20] sm:$0xff]
    %v925 = vld [vmem:[%s4 + $0x28] sm:$0xff]
    %v926 = vld [vmem:[%s4 + $0x30] sm:$0xff]
    %v927 = vld [vmem:[%s4 + $0x38] sm:$0xff]
    %v928 = vperm.slane %v162, 3
    %vm929 = vcmask 523264
    %v931 = vsel %vm929, %v918, 0
    %v934 = vsel %vm929, %v919, 0
    %936 = vmatpush.msra.mxu0 0.0
    %937 = vmatpush.msra.mxu0 0.0
    %938 = vmatpush.msra.mxu0 0.0
    %939 = vmatpush.msra.mxu0 0.0
    %940 = vmatpush.msra.mxu0 0.0
    %941 = vmatpush.msra.mxu0 0.0
    %942 = vmatpush.msra.mxu0 0.0
    %943 = vmatpush.msra.mxu0 0.0
    %944 = vmatpush.msra.mxu0 %v927
    %945 = vmatpush.msra.mxu0 %v926
    %946 = vmatpush.msra.mxu0 %v925
    %947 = vmatpush.msra.mxu0 %v924
    %948 = vmatpush.msra.mxu0 %v923
    %949 = vmatpush.msra.mxu0 %v922
    %950 = vmatpush.msra.mxu0 %v921
    %951 = vmatpush.msra.mxu0 %v920
    %952 = vmatmul.f32.gmra.mxu0 %v931
    %v953 = vpop.f32.mrf.mxu0
    %v954 = vadd.f32 %v928, %v953
    %955 = vmatmul.f32.gmra.mxu0 %v934
    %v956 = vpop.f32.mrf.mxu0
    %v957 = vadd.f32 %v928, %v956
    %958 = vdwg.mxu0
    %v959 = vadd.f32 %v954, %v870
    %v960 = vadd.f32 %v957, %v871
    %v961 = vsel %vm94, %v959, 0.0
    %962 = vadd.xlane.f32.xlu0 %v961
    %v963 = vpop.xlane.xlu0 %962
    %v964 = vsel %vm94, %v960, 0.0
    %965 = vadd.xlane.f32.xlu0 %v964
    %v966 = vpop.xlane.xlu0 %965
    %v967 = vmul.f32 %v963, %v107
    %v968 = vmul.f32 %v966, %v107
    %v969 = vsub.f32 %v959, %v967
    %v970 = vsub.f32 %v960, %v968
    %v971 = vmul.f32 %v969, %v969
    %v972 = vmul.f32 %v970, %v970
    %v973 = vsel %vm94, %v971, 0.0
    %974 = vadd.xlane.f32.xlu0 %v973
    %v975 = vpop.xlane.xlu0 %974
    %v976 = vsel %vm94, %v972, 0.0
    %977 = vadd.xlane.f32.xlu0 %v976
    %v978 = vpop.xlane.xlu0 %977
    %v979 = vmul.f32 %v975, %v107
    %v980 = vmul.f32 %v978, %v107
    %v981 = vadd.f32 %v979, 1e-12
    %v982 = vadd.f32 %v980, 1e-12
    %v983 = vrsqrt.pop %v981
    %v984 = vmul.f32 %v983, %v981
    %v985 = vmul.f32 %v984, %v983
    %v986 = vmul.f32 0.5, %v985
    %v987 = vsub.f32 1.5, %v986
    %v988 = vmul.f32 %v983, %v987
    %vm989 = vweird.f32 %v981
    %vm990 = vweird.f32 %v983
    %vm991 = vmor %vm989, %vm990
    %v992 = vsel %vm991, %v983, %v988
    %v993 = vrsqrt.pop %v982
    %v994 = vmul.f32 %v993, %v982
    %v995 = vmul.f32 %v994, %v993
    %v996 = vmul.f32 0.5, %v995
    %v997 = vsub.f32 1.5, %v996
    %v998 = vmul.f32 %v993, %v997
    %vm999 = vweird.f32 %v982
    %vm1000 = vweird.f32 %v993
    %vm1001 = vmor %vm999, %vm1000
    %v1002 = vsel %vm1001, %v993, %v998
    %v1003 = vmul.f32 %v969, %v992
    %v1004 = vmul.f32 %v970, %v1002
    %v1005 = vperm.slane %v162, 6
    %v1006 = vmul.f32 %v1003, %v1005
    %v1007 = vmul.f32 %v1004, %v1005
    %v1008 = vperm.slane %v162, 7
    %v1009 = vadd.f32 %v1006, %v1008
    %v1010 = vadd.f32 %v1007, %v1008
    %s1011 = scalar_lea.vmem %s3, 64
    %v1012 = vld [vmem:[%s1011] sm:$0xff]
    %v1013 = vld [vmem:[%s1011 + $0x8] sm:$0xff]
    %v1014 = vld [vmem:[%s1011 + $0x10] sm:$0xff]
    %v1015 = vld [vmem:[%s1011 + $0x18] sm:$0xff]
    %v1016 = vld [vmem:[%s1011 + $0x20] sm:$0xff]
    %v1017 = vld [vmem:[%s1011 + $0x28] sm:$0xff]
    %v1018 = vld [vmem:[%s1011 + $0x30] sm:$0xff]
    %v1019 = vld [vmem:[%s1011 + $0x38] sm:$0xff]
    %s1020 = scalar_lea.vmem %s5, 8
    %v1021 = vld [vmem:[%s1020] sm:$0xff]
    %v1022 = vperm.slane %v1021, 0
    %v1024 = vsel %vm94, %v1009, 0
    %v1027 = vsel %vm94, %v1010, 0
    %1029 = vmatpush.msra.mxu0 0.0
    %1030 = vmatpush.msra.mxu0 0.0
    %1031 = vmatpush.msra.mxu0 0.0
    %1032 = vmatpush.msra.mxu0 0.0
    %1033 = vmatpush.msra.mxu0 0.0
    %1034 = vmatpush.msra.mxu0 0.0
    %1035 = vmatpush.msra.mxu0 0.0
    %1036 = vmatpush.msra.mxu0 0.0
    %1037 = vmatpush.msra.mxu0 0.0
    %1038 = vmatpush.msra.mxu0 0.0
    %1039 = vmatpush.msra.mxu0 0.0
    %1040 = vmatpush.msra.mxu0 0.0
    %1041 = vmatpush.msra.mxu0 %v1018
    %1042 = vmatpush.msra.mxu0 %v1016
    %1043 = vmatpush.msra.mxu0 %v1014
    %1044 = vmatpush.msra.mxu0 %v1012
    %1045 = vmatmul.f32.gmra.mxu0 %v1024
    %v1046 = vpop.f32.mrf.mxu0
    %v1047 = vadd.f32 %v1022, %v1046
    %1048 = vmatmul.f32.gmra.mxu0 %v1027
    %v1049 = vpop.f32.mrf.mxu0
    %v1050 = vadd.f32 %v1022, %v1049
    %1051 = vdwg.mxu0
    %1054 = vrot.lane.b32.xlu0 %v1047, 96
    %v1055 = vpop.permute.xlu0 %1054
    %1056 = vrot.lane.b32.xlu0 %v1050, 96
    %v1057 = vpop.permute.xlu0 %1056
    %v1058 = vsel %vm199, %v1047, 0
    %v1060 = vsel %vm199, %v1050, 0
    %v1062 = vsel %vm199, %v1055, 0
    %v1064 = vsel %vm199, %v1057, 0
    %1066 = vmatpush.xpose.msra.mxu0 0.0
    %1067 = vmatpush.xpose.msra.mxu0 0.0
    %1068 = vmatpush.xpose.msra.mxu0 0.0
    %1069 = vmatpush.xpose.msra.mxu0 0.0
    %1070 = vmatpush.xpose.msra.mxu0 0.0
    %1071 = vmatpush.xpose.msra.mxu0 0.0
    %1072 = vmatpush.xpose.msra.mxu0 0.0
    %1073 = vmatpush.xpose.msra.mxu0 0.0
    %1074 = vmatpush.xpose.msra.mxu0 0.0
    %1075 = vmatpush.xpose.msra.mxu0 0.0
    %1076 = vmatpush.xpose.msra.mxu0 0.0
    %1077 = vmatpush.xpose.msra.mxu0 0.0
    %1078 = vmatpush.xpose.msra.mxu0 0.0
    %1079 = vmatpush.xpose.msra.mxu0 0.0
    %1080 = vmatpush.xpose.msra.mxu0 %v1064
    %1081 = vmatpush.xpose.msra.mxu0 %v1062
    %1082 = vmatmul.f32.gmra.mxu0 %v1058
    %v1083 = vpop.f32.mrf.mxu0
    %v1084 = vadd.f32 %v152, %v1083
    %1085 = vmatmul.f32.gmra.mxu0 %v1060
    %v1086 = vpop.f32.mrf.mxu0
    %v1087 = vadd.f32 %v153, %v1086
    %1088 = vdwg.mxu0
    %v1089 = vsel %vm231, %v1084, -inf
    %1090 = vmax.xlane.f32.xlu0 %v1089
    %v1091 = vpop.xlane.xlu0 %1090
    %v1092 = vsel %vm231, %v1087, -inf
    %1093 = vmax.xlane.f32.xlu0 %v1092
    %v1094 = vpop.xlane.xlu0 %1093
    %v1095 = vsub.f32 %v1084, %v1091
    %v1096 = vsub.f32 %v1087, %v1094
    %v1097 = vmul.f32 %v1095, 1.442695
    %v1098 = vpow.pop %v1097
    %v1099 = vmul.f32 %v1096, 1.442695
    %v1100 = vpow.pop %v1099
    %v1101 = vsel %vm231, %v1098, 0.0
    %1102 = vadd.xlane.f32.xlu0 %v1101
    %v1103 = vpop.xlane.xlu0 %1102
    %v1104 = vsel %vm231, %v1100, 0.0
    %1105 = vadd.xlane.f32.xlu0 %v1104
    %v1106 = vpop.xlane.xlu0 %1105
    %v1107 = vrcp.pop %v1103
    %v1108 = vmul.f32 %v1103, %v1107
    %v1109 = vsub.f32 1.0, %v1108
    %v1110 = vmul.f32 %v1107, %v1109
    %v1111 = vadd.f32 %v1107, %v1110
    %vm1112 = vweird.f32 %v1103
    %vm1113 = vweird.f32 %v1107
    %vm1114 = vmor %vm1112, %vm1113
    %v1115 = vsel %vm1114, %v1107, %v1111
    %v1116 = vand.u32 2147483647, %v1103
    %vm1117 = vcmp.eq.f32.partialorder %v1116, 8.507059e+37
    %v1118 = vand.u32 %v1103, 2147483648
    %v1119 = vor.u32 1.1754944e-38, %v1118
    %v1120 = vsel %vm1117, %v1119, %v1115
    %v1121 = vmul.f32 %v1098, %v1120
    %v1122 = vrcp.pop %v1106
    %v1123 = vmul.f32 %v1106, %v1122
    %v1124 = vsub.f32 1.0, %v1123
    %v1125 = vmul.f32 %v1122, %v1124
    %v1126 = vadd.f32 %v1122, %v1125
    %vm1127 = vweird.f32 %v1106
    %vm1128 = vweird.f32 %v1122
    %vm1129 = vmor %vm1127, %vm1128
    %v1130 = vsel %vm1129, %v1122, %v1126
    %v1131 = vand.u32 2147483647, %v1106
    %vm1132 = vcmp.eq.f32.partialorder %v1131, 8.507059e+37
    %v1133 = vand.u32 %v1106, 2147483648
    %v1134 = vor.u32 1.1754944e-38, %v1133
    %v1135 = vsel %vm1132, %v1134, %v1130
    %v1136 = vmul.f32 %v1100, %v1135
    %1137 = vrot.lane.b32.xlu0 %v1047, 64
    %v1138 = vpop.permute.xlu0 %1137
    %1139 = vrot.lane.b32.xlu0 %v1050, 64
    %v1140 = vpop.permute.xlu0 %1139
    %v1144 = vsel %vm231, %v1121, 0
    %v1147 = vsel %vm231, %v1136, 0
    %1149 = vmatpush.msra.mxu0 0.0
    %1150 = vmatpush.msra.mxu0 0.0
    %1151 = vmatpush.msra.mxu0 0.0
    %1152 = vmatpush.msra.mxu0 0.0
    %1153 = vmatpush.msra.mxu0 0.0
    %1154 = vmatpush.msra.mxu0 0.0
    %1155 = vmatpush.msra.mxu0 0.0
    %1156 = vmatpush.msra.mxu0 0.0
    %1157 = vmatpush.msra.mxu0 0.0
    %1158 = vmatpush.msra.mxu0 0.0
    %1159 = vmatpush.msra.mxu0 0.0
    %1160 = vmatpush.msra.mxu0 0.0
    %1161 = vmatpush.msra.mxu0 0.0
    %1162 = vmatpush.msra.mxu0 0.0
    %1163 = vmatpush.msra.mxu0 %v1140
    %1164 = vmatpush.msra.mxu0 %v1138
    %1165 = vmatmul.f32.gmra.mxu0 %v1144
    %v1166 = vpop.f32.mrf.mxu0
    %v1167 = vadd.f32 0.0, %v1166
    %1168 = vmatmul.f32.gmra.mxu0 %v1147
    %v1169 = vpop.f32.mrf.mxu0
    %v1170 = vadd.f32 0.0, %v1169
    %1171 = vdwg.mxu0
    %1172 = vrot.lane.b32.xlu0 %v1047, 120
    %v1173 = vpop.permute.xlu0 %1172
    %1174 = vrot.lane.b32.xlu0 %v1050, 120
    %v1175 = vpop.permute.xlu0 %1174
    %1176 = vrot.lane.b32.xlu0 %v1047, 88
    %v1177 = vpop.permute.xlu0 %1176
    %1178 = vrot.lane.b32.xlu0 %v1050, 88
    %v1179 = vpop.permute.xlu0 %1178
    %v1180 = vsel %vm199, %v1173, 0
    %v1182 = vsel %vm199, %v1175, 0
    %v1184 = vsel %vm199, %v1177, 0
    %v1186 = vsel %vm199, %v1179, 0
    %1188 = vmatpush.xpose.msra.mxu0 0.0
    %1189 = vmatpush.xpose.msra.mxu0 0.0
    %1190 = vmatpush.xpose.msra.mxu0 0.0
    %1191 = vmatpush.xpose.msra.mxu0 0.0
    %1192 = vmatpush.xpose.msra.mxu0 0.0
    %1193 = vmatpush.xpose.msra.mxu0 0.0
    %1194 = vmatpush.xpose.msra.mxu0 0.0
    %1195 = vmatpush.xpose.msra.mxu0 0.0
    %1196 = vmatpush.xpose.msra.mxu0 0.0
    %1197 = vmatpush.xpose.msra.mxu0 0.0
    %1198 = vmatpush.xpose.msra.mxu0 0.0
    %1199 = vmatpush.xpose.msra.mxu0 0.0
    %1200 = vmatpush.xpose.msra.mxu0 0.0
    %1201 = vmatpush.xpose.msra.mxu0 0.0
    %1202 = vmatpush.xpose.msra.mxu0 %v1186
    %1203 = vmatpush.xpose.msra.mxu0 %v1184
    %1204 = vmatmul.f32.gmra.mxu0 %v1180
    %v1205 = vpop.f32.mrf.mxu0
    %v1206 = vadd.f32 %v152, %v1205
    %1207 = vmatmul.f32.gmra.mxu0 %v1182
    %v1208 = vpop.f32.mrf.mxu0
    %v1209 = vadd.f32 %v153, %v1208
    %1210 = vdwg.mxu0
    %v1211 = vsel %vm231, %v1206, -inf
    %1212 = vmax.xlane.f32.xlu0 %v1211
    %v1213 = vpop.xlane.xlu0 %1212
    %v1214 = vsel %vm231, %v1209, -inf
    %1215 = vmax.xlane.f32.xlu0 %v1214
    %v1216 = vpop.xlane.xlu0 %1215
    %v1217 = vsub.f32 %v1206, %v1213
    %v1218 = vsub.f32 %v1209, %v1216
    %v1219 = vmul.f32 %v1217, 1.442695
    %v1220 = vpow.pop %v1219
    %v1221 = vmul.f32 %v1218, 1.442695
    %v1222 = vpow.pop %v1221
    %v1223 = vsel %vm231, %v1220, 0.0
    %1224 = vadd.xlane.f32.xlu0 %v1223
    %v1225 = vpop.xlane.xlu0 %1224
    %v1226 = vsel %vm231, %v1222, 0.0
    %1227 = vadd.xlane.f32.xlu0 %v1226
    %v1228 = vpop.xlane.xlu0 %1227
    %v1229 = vrcp.pop %v1225
    %v1230 = vmul.f32 %v1225, %v1229
    %v1231 = vsub.f32 1.0, %v1230
    %v1232 = vmul.f32 %v1229, %v1231
    %v1233 = vadd.f32 %v1229, %v1232
    %vm1234 = vweird.f32 %v1225
    %vm1235 = vweird.f32 %v1229
    %vm1236 = vmor %vm1234, %vm1235
    %v1237 = vsel %vm1236, %v1229, %v1233
    %v1238 = vand.u32 2147483647, %v1225
    %vm1239 = vcmp.eq.f32.partialorder %v1238, 8.507059e+37
    %v1240 = vand.u32 %v1225, 2147483648
    %v1241 = vor.u32 1.1754944e-38, %v1240
    %v1242 = vsel %vm1239, %v1241, %v1237
    %v1243 = vmul.f32 %v1220, %v1242
    %v1244 = vrcp.pop %v1228
    %v1245 = vmul.f32 %v1228, %v1244
    %v1246 = vsub.f32 1.0, %v1245
    %v1247 = vmul.f32 %v1244, %v1246
    %v1248 = vadd.f32 %v1244, %v1247
    %vm1249 = vweird.f32 %v1228
    %vm1250 = vweird.f32 %v1244
    %vm1251 = vmor %vm1249, %vm1250
    %v1252 = vsel %vm1251, %v1244, %v1248
    %v1253 = vand.u32 2147483647, %v1228
    %vm1254 = vcmp.eq.f32.partialorder %v1253, 8.507059e+37
    %v1255 = vand.u32 %v1228, 2147483648
    %v1256 = vor.u32 1.1754944e-38, %v1255
    %v1257 = vsel %vm1254, %v1256, %v1252
    %v1258 = vmul.f32 %v1222, %v1257
    %1259 = vrot.lane.b32.xlu0 %v1047, 56
    %v1260 = vpop.permute.xlu0 %1259
    %1261 = vrot.lane.b32.xlu0 %v1050, 56
    %v1262 = vpop.permute.xlu0 %1261
    %v1266 = vsel %vm231, %v1243, 0
    %v1269 = vsel %vm231, %v1258, 0
    %1271 = vmatpush.msra.mxu0 0.0
    %1272 = vmatpush.msra.mxu0 0.0
    %1273 = vmatpush.msra.mxu0 0.0
    %1274 = vmatpush.msra.mxu0 0.0
    %1275 = vmatpush.msra.mxu0 0.0
    %1276 = vmatpush.msra.mxu0 0.0
    %1277 = vmatpush.msra.mxu0 0.0
    %1278 = vmatpush.msra.mxu0 0.0
    %1279 = vmatpush.msra.mxu0 0.0
    %1280 = vmatpush.msra.mxu0 0.0
    %1281 = vmatpush.msra.mxu0 0.0
    %1282 = vmatpush.msra.mxu0 0.0
    %1283 = vmatpush.msra.mxu0 0.0
    %1284 = vmatpush.msra.mxu0 0.0
    %1285 = vmatpush.msra.mxu0 %v1262
    %1286 = vmatpush.msra.mxu0 %v1260
    %1287 = vmatmul.f32.gmra.mxu0 %v1266
    %v1288 = vpop.f32.mrf.mxu0
    %v1289 = vadd.f32 0.0, %v1288
    %1290 = vmatmul.f32.gmra.mxu0 %v1269
    %v1291 = vpop.f32.mrf.mxu0
    %v1292 = vadd.f32 0.0, %v1291
    %1293 = vdwg.mxu0
    %1295 = vrot.lane.b32.xlu0 %v1014, 32
    %v1296 = vpop.permute.xlu0 %1295
    %v1299 = vsel %vm199, %v1289, 0
    %v1302 = vsel %vm199, %v1292, 0
    %1304 = vmatpush.msra.mxu0 0.0
    %1305 = vmatpush.msra.mxu0 0.0
    %1306 = vmatpush.msra.mxu0 0.0
    %1307 = vmatpush.msra.mxu0 0.0
    %1308 = vmatpush.msra.mxu0 0.0
    %1309 = vmatpush.msra.mxu0 0.0
    %1310 = vmatpush.msra.mxu0 0.0
    %1311 = vmatpush.msra.mxu0 0.0
    %1312 = vmatpush.msra.mxu0 0.0
    %1313 = vmatpush.msra.mxu0 0.0
    %1314 = vmatpush.msra.mxu0 0.0
    %1315 = vmatpush.msra.mxu0 0.0
    %1316 = vmatpush.msra.mxu0 0.0
    %1317 = vmatpush.msra.mxu0 0.0
    %1318 = vmatpush.msra.mxu0 0.0
    %1319 = vmatpush.msra.mxu0 %v1296
    %1320 = vmatmul.f32.gmra.mxu0 %v1299
    %v1321 = vpop.f32.mrf.mxu0
    %v1322 = vadd.f32 0.0, %v1321
    %1323 = vmatmul.f32.gmra.mxu0 %v1302
    %v1324 = vpop.f32.mrf.mxu0
    %v1325 = vadd.f32 0.0, %v1324
    %1326 = vdwg.mxu0
    %1328 = vrot.lane.b32.xlu0 %v1012, 32
    %v1329 = vpop.permute.xlu0 %1328
    %v1332 = vsel %vm199, %v1167, 0
    %v1335 = vsel %vm199, %v1170, 0
    %1337 = vmatpush.msra.mxu0 0.0
    %1338 = vmatpush.msra.mxu0 0.0
    %1339 = vmatpush.msra.mxu0 0.0
    %1340 = vmatpush.msra.mxu0 0.0
    %1341 = vmatpush.msra.mxu0 0.0
    %1342 = vmatpush.msra.mxu0 0.0
    %1343 = vmatpush.msra.mxu0 0.0
    %1344 = vmatpush.msra.mxu0 0.0
    %1345 = vmatpush.msra.mxu0 0.0
    %1346 = vmatpush.msra.mxu0 0.0
    %1347 = vmatpush.msra.mxu0 0.0
    %1348 = vmatpush.msra.mxu0 0.0
    %1349 = vmatpush.msra.mxu0 0.0
    %1350 = vmatpush.msra.mxu0 0.0
    %1351 = vmatpush.msra.mxu0 0.0
    %1352 = vmatpush.msra.mxu0 %v1329
    %1353 = vmatmul.f32.gmra.mxu0 %v1332
    %v1354 = vpop.f32.mrf.mxu0
    %v1355 = vadd.f32 %v1322, %v1354
    %1356 = vmatmul.f32.gmra.mxu0 %v1335
    %v1357 = vpop.f32.mrf.mxu0
    %v1358 = vadd.f32 %v1325, %v1357
    %1359 = vdwg.mxu0
    %1360 = vrot.lane.b32.xlu0 %v1047, 112
    %v1361 = vpop.permute.xlu0 %1360
    %1362 = vrot.lane.b32.xlu0 %v1050, 112
    %v1363 = vpop.permute.xlu0 %1362
    %1364 = vrot.lane.b32.xlu0 %v1047, 80
    %v1365 = vpop.permute.xlu0 %1364
    %1366 = vrot.lane.b32.xlu0 %v1050, 80
    %v1367 = vpop.permute.xlu0 %1366
    %v1368 = vsel %vm199, %v1361, 0
    %v1370 = vsel %vm199, %v1363, 0
    %v1372 = vsel %vm199, %v1365, 0
    %v1374 = vsel %vm199, %v1367, 0
    %1376 = vmatpush.xpose.msra.mxu0 0.0
    %1377 = vmatpush.xpose.msra.mxu0 0.0
    %1378 = vmatpush.xpose.msra.mxu0 0.0
    %1379 = vmatpush.xpose.msra.mxu0 0.0
    %1380 = vmatpush.xpose.msra.mxu0 0.0
    %1381 = vmatpush.xpose.msra.mxu0 0.0
    %1382 = vmatpush.xpose.msra.mxu0 0.0
    %1383 = vmatpush.xpose.msra.mxu0 0.0
    %1384 = vmatpush.xpose.msra.mxu0 0.0
    %1385 = vmatpush.xpose.msra.mxu0 0.0
    %1386 = vmatpush.xpose.msra.mxu0 0.0
    %1387 = vmatpush.xpose.msra.mxu0 0.0
    %1388 = vmatpush.xpose.msra.mxu0 0.0
    %1389 = vmatpush.xpose.msra.mxu0 0.0
    %1390 = vmatpush.xpose.msra.mxu0 %v1374
    %1391 = vmatpush.xpose.msra.mxu0 %v1372
    %1392 = vmatmul.f32.gmra.mxu0 %v1368
    %v1393 = vpop.f32.mrf.mxu0
    %v1394 = vadd.f32 %v152, %v1393
    %1395 = vmatmul.f32.gmra.mxu0 %v1370
    %v1396 = vpop.f32.mrf.mxu0
    %v1397 = vadd.f32 %v153, %v1396
    %1398 = vdwg.mxu0
    %v1399 = vsel %vm231, %v1394, -inf
    %1400 = vmax.xlane.f32.xlu0 %v1399
    %v1401 = vpop.xlane.xlu0 %1400
    %v1402 = vsel %vm231, %v1397, -inf
    %1403 = vmax.xlane.f32.xlu0 %v1402
    %v1404 = vpop.xlane.xlu0 %1403
    %v1405 = vsub.f32 %v1394, %v1401
    %v1406 = vsub.f32 %v1397, %v1404
    %v1407 = vmul.f32 %v1405, 1.442695
    %v1408 = vpow.pop %v1407
    %v1409 = vmul.f32 %v1406, 1.442695
    %v1410 = vpow.pop %v1409
    %v1411 = vsel %vm231, %v1408, 0.0
    %1412 = vadd.xlane.f32.xlu0 %v1411
    %v1413 = vpop.xlane.xlu0 %1412
    %v1414 = vsel %vm231, %v1410, 0.0
    %1415 = vadd.xlane.f32.xlu0 %v1414
    %v1416 = vpop.xlane.xlu0 %1415
    %v1417 = vrcp.pop %v1413
    %v1418 = vmul.f32 %v1413, %v1417
    %v1419 = vsub.f32 1.0, %v1418
    %v1420 = vmul.f32 %v1417, %v1419
    %v1421 = vadd.f32 %v1417, %v1420
    %vm1422 = vweird.f32 %v1413
    %vm1423 = vweird.f32 %v1417
    %vm1424 = vmor %vm1422, %vm1423
    %v1425 = vsel %vm1424, %v1417, %v1421
    %v1426 = vand.u32 2147483647, %v1413
    %vm1427 = vcmp.eq.f32.partialorder %v1426, 8.507059e+37
    %v1428 = vand.u32 %v1413, 2147483648
    %v1429 = vor.u32 1.1754944e-38, %v1428
    %v1430 = vsel %vm1427, %v1429, %v1425
    %v1431 = vmul.f32 %v1408, %v1430
    %v1432 = vrcp.pop %v1416
    %v1433 = vmul.f32 %v1416, %v1432
    %v1434 = vsub.f32 1.0, %v1433
    %v1435 = vmul.f32 %v1432, %v1434
    %v1436 = vadd.f32 %v1432, %v1435
    %vm1437 = vweird.f32 %v1416
    %vm1438 = vweird.f32 %v1432
    %vm1439 = vmor %vm1437, %vm1438
    %v1440 = vsel %vm1439, %v1432, %v1436
    %v1441 = vand.u32 2147483647, %v1416
    %vm1442 = vcmp.eq.f32.partialorder %v1441, 8.507059e+37
    %v1443 = vand.u32 %v1416, 2147483648
    %v1444 = vor.u32 1.1754944e-38, %v1443
    %v1445 = vsel %vm1442, %v1444, %v1440
    %v1446 = vmul.f32 %v1410, %v1445
    %1447 = vrot.lane.b32.xlu0 %v1047, 48
    %v1448 = vpop.permute.xlu0 %1447
    %1449 = vrot.lane.b32.xlu0 %v1050, 48
    %v1450 = vpop.permute.xlu0 %1449
    %v1454 = vsel %vm231, %v1431, 0
    %v1457 = vsel %vm231, %v1446, 0
    %1459 = vmatpush.msra.mxu0 0.0
    %1460 = vmatpush.msra.mxu0 0.0
    %1461 = vmatpush.msra.mxu0 0.0
    %1462 = vmatpush.msra.mxu0 0.0
    %1463 = vmatpush.msra.mxu0 0.0
    %1464 = vmatpush.msra.mxu0 0.0
    %1465 = vmatpush.msra.mxu0 0.0
    %1466 = vmatpush.msra.mxu0 0.0
    %1467 = vmatpush.msra.mxu0 0.0
    %1468 = vmatpush.msra.mxu0 0.0
    %1469 = vmatpush.msra.mxu0 0.0
    %1470 = vmatpush.msra.mxu0 0.0
    %1471 = vmatpush.msra.mxu0 0.0
    %1472 = vmatpush.msra.mxu0 0.0
    %1473 = vmatpush.msra.mxu0 %v1450
    %1474 = vmatpush.msra.mxu0 %v1448
    %1475 = vmatmul.f32.gmra.mxu0 %v1454
    %v1476 = vpop.f32.mrf.mxu0
    %v1477 = vadd.f32 0.0, %v1476
    %1478 = vmatmul.f32.gmra.mxu0 %v1457
    %v1479 = vpop.f32.mrf.mxu0
    %v1480 = vadd.f32 0.0, %v1479
    %1481 = vdwg.mxu0
    %1483 = vrot.lane.b32.xlu0 %v1016, 32
    %v1484 = vpop.permute.xlu0 %1483
    %v1487 = vsel %vm199, %v1477, 0
    %v1490 = vsel %vm199, %v1480, 0
    %1492 = vmatpush.msra.mxu0 0.0
    %1493 = vmatpush.msra.mxu0 0.0
    %1494 = vmatpush.msra.mxu0 0.0
    %1495 = vmatpush.msra.mxu0 0.0
    %1496 = vmatpush.msra.mxu0 0.0
    %1497 = vmatpush.msra.mxu0 0.0
    %1498 = vmatpush.msra.mxu0 0.0
    %1499 = vmatpush.msra.mxu0 0.0
    %1500 = vmatpush.msra.mxu0 0.0
    %1501 = vmatpush.msra.mxu0 0.0
    %1502 = vmatpush.msra.mxu0 0.0
    %1503 = vmatpush.msra.mxu0 0.0
    %1504 = vmatpush.msra.mxu0 0.0
    %1505 = vmatpush.msra.mxu0 0.0
    %1506 = vmatpush.msra.mxu0 0.0
    %1507 = vmatpush.msra.mxu0 %v1484
    %1508 = vmatmul.f32.gmra.mxu0 %v1487
    %v1509 = vpop.f32.mrf.mxu0
    %v1510 = vadd.f32 0.0, %v1509
    %1511 = vmatmul.f32.gmra.mxu0 %v1490
    %v1512 = vpop.f32.mrf.mxu0
    %v1513 = vadd.f32 0.0, %v1512
    %1514 = vdwg.mxu0
    %v1515 = vadd.f32 %v1355, %v1510
    %v1516 = vadd.f32 %v1358, %v1513
    %1517 = vrot.lane.b32.xlu0 %v1047, 104
    %v1518 = vpop.permute.xlu0 %1517
    %1519 = vrot.lane.b32.xlu0 %v1050, 104
    %v1520 = vpop.permute.xlu0 %1519
    %1521 = vrot.lane.b32.xlu0 %v1047, 72
    %v1522 = vpop.permute.xlu0 %1521
    %1523 = vrot.lane.b32.xlu0 %v1050, 72
    %v1524 = vpop.permute.xlu0 %1523
    %v1525 = vsel %vm199, %v1518, 0
    %v1527 = vsel %vm199, %v1520, 0
    %v1529 = vsel %vm199, %v1522, 0
    %v1531 = vsel %vm199, %v1524, 0
    %1533 = vmatpush.xpose.msra.mxu0 0.0
    %1534 = vmatpush.xpose.msra.mxu0 0.0
    %1535 = vmatpush.xpose.msra.mxu0 0.0
    %1536 = vmatpush.xpose.msra.mxu0 0.0
    %1537 = vmatpush.xpose.msra.mxu0 0.0
    %1538 = vmatpush.xpose.msra.mxu0 0.0
    %1539 = vmatpush.xpose.msra.mxu0 0.0
    %1540 = vmatpush.xpose.msra.mxu0 0.0
    %1541 = vmatpush.xpose.msra.mxu0 0.0
    %1542 = vmatpush.xpose.msra.mxu0 0.0
    %1543 = vmatpush.xpose.msra.mxu0 0.0
    %1544 = vmatpush.xpose.msra.mxu0 0.0
    %1545 = vmatpush.xpose.msra.mxu0 0.0
    %1546 = vmatpush.xpose.msra.mxu0 0.0
    %1547 = vmatpush.xpose.msra.mxu0 %v1531
    %1548 = vmatpush.xpose.msra.mxu0 %v1529
    %1549 = vmatmul.f32.gmra.mxu0 %v1525
    %v1550 = vpop.f32.mrf.mxu0
    %v1551 = vadd.f32 %v152, %v1550
    %1552 = vmatmul.f32.gmra.mxu0 %v1527
    %v1553 = vpop.f32.mrf.mxu0
    %v1554 = vadd.f32 %v153, %v1553
    %1555 = vdwg.mxu0
    %v1556 = vsel %vm231, %v1551, -inf
    %1557 = vmax.xlane.f32.xlu0 %v1556
    %v1558 = vpop.xlane.xlu0 %1557
    %v1559 = vsel %vm231, %v1554, -inf
    %1560 = vmax.xlane.f32.xlu0 %v1559
    %v1561 = vpop.xlane.xlu0 %1560
    %v1562 = vsub.f32 %v1551, %v1558
    %v1563 = vsub.f32 %v1554, %v1561
    %v1564 = vmul.f32 %v1562, 1.442695
    %v1565 = vpow.pop %v1564
    %v1566 = vmul.f32 %v1563, 1.442695
    %v1567 = vpow.pop %v1566
    %v1568 = vsel %vm231, %v1565, 0.0
    %1569 = vadd.xlane.f32.xlu0 %v1568
    %v1570 = vpop.xlane.xlu0 %1569
    %v1571 = vsel %vm231, %v1567, 0.0
    %1572 = vadd.xlane.f32.xlu0 %v1571
    %v1573 = vpop.xlane.xlu0 %1572
    %v1574 = vrcp.pop %v1570
    %v1575 = vmul.f32 %v1570, %v1574
    %v1576 = vsub.f32 1.0, %v1575
    %v1577 = vmul.f32 %v1574, %v1576
    %v1578 = vadd.f32 %v1574, %v1577
    %vm1579 = vweird.f32 %v1570
    %vm1580 = vweird.f32 %v1574
    %vm1581 = vmor %vm1579, %vm1580
    %v1582 = vsel %vm1581, %v1574, %v1578
    %v1583 = vand.u32 2147483647, %v1570
    %vm1584 = vcmp.eq.f32.partialorder %v1583, 8.507059e+37
    %v1585 = vand.u32 %v1570, 2147483648
    %v1586 = vor.u32 1.1754944e-38, %v1585
    %v1587 = vsel %vm1584, %v1586, %v1582
    %v1588 = vmul.f32 %v1565, %v1587
    %v1589 = vrcp.pop %v1573
    %v1590 = vmul.f32 %v1573, %v1589
    %v1591 = vsub.f32 1.0, %v1590
    %v1592 = vmul.f32 %v1589, %v1591
    %v1593 = vadd.f32 %v1589, %v1592
    %vm1594 = vweird.f32 %v1573
    %vm1595 = vweird.f32 %v1589
    %vm1596 = vmor %vm1594, %vm1595
    %v1597 = vsel %vm1596, %v1589, %v1593
    %v1598 = vand.u32 2147483647, %v1573
    %vm1599 = vcmp.eq.f32.partialorder %v1598, 8.507059e+37
    %v1600 = vand.u32 %v1573, 2147483648
    %v1601 = vor.u32 1.1754944e-38, %v1600
    %v1602 = vsel %vm1599, %v1601, %v1597
    %v1603 = vmul.f32 %v1567, %v1602
    %1604 = vrot.lane.b32.xlu0 %v1047, 40
    %v1605 = vpop.permute.xlu0 %1604
    %1606 = vrot.lane.b32.xlu0 %v1050, 40
    %v1607 = vpop.permute.xlu0 %1606
    %v1611 = vsel %vm231, %v1588, 0
    %v1614 = vsel %vm231, %v1603, 0
    %1616 = vmatpush.msra.mxu0 0.0
    %1617 = vmatpush.msra.mxu0 0.0
    %1618 = vmatpush.msra.mxu0 0.0
    %1619 = vmatpush.msra.mxu0 0.0
    %1620 = vmatpush.msra.mxu0 0.0
    %1621 = vmatpush.msra.mxu0 0.0
    %1622 = vmatpush.msra.mxu0 0.0
    %1623 = vmatpush.msra.mxu0 0.0
    %1624 = vmatpush.msra.mxu0 0.0
    %1625 = vmatpush.msra.mxu0 0.0
    %1626 = vmatpush.msra.mxu0 0.0
    %1627 = vmatpush.msra.mxu0 0.0
    %1628 = vmatpush.msra.mxu0 0.0
    %1629 = vmatpush.msra.mxu0 0.0
    %1630 = vmatpush.msra.mxu0 %v1607
    %1631 = vmatpush.msra.mxu0 %v1605
    %1632 = vmatmul.f32.gmra.mxu0 %v1611
    %v1633 = vpop.f32.mrf.mxu0
    %v1634 = vadd.f32 0.0, %v1633
    %1635 = vmatmul.f32.gmra.mxu0 %v1614
    %v1636 = vpop.f32.mrf.mxu0
    %v1637 = vadd.f32 0.0, %v1636
    %1638 = vdwg.mxu0
    %1640 = vrot.lane.b32.xlu0 %v1018, 32
    %v1641 = vpop.permute.xlu0 %1640
    %v1644 = vsel %vm199, %v1634, 0
    %v1647 = vsel %vm199, %v1637, 0
    %1649 = vmatpush.msra.mxu0 0.0
    %1650 = vmatpush.msra.mxu0 0.0
    %1651 = vmatpush.msra.mxu0 0.0
    %1652 = vmatpush.msra.mxu0 0.0
    %1653 = vmatpush.msra.mxu0 0.0
    %1654 = vmatpush.msra.mxu0 0.0
    %1655 = vmatpush.msra.mxu0 0.0
    %1656 = vmatpush.msra.mxu0 0.0
    %1657 = vmatpush.msra.mxu0 0.0
    %1658 = vmatpush.msra.mxu0 0.0
    %1659 = vmatpush.msra.mxu0 0.0
    %1660 = vmatpush.msra.mxu0 0.0
    %1661 = vmatpush.msra.mxu0 0.0
    %1662 = vmatpush.msra.mxu0 0.0
    %1663 = vmatpush.msra.mxu0 0.0
    %1664 = vmatpush.msra.mxu0 %v1641
    %1665 = vmatmul.f32.gmra.mxu0 %v1644
    %v1666 = vpop.f32.mrf.mxu0
    %v1667 = vadd.f32 0.0, %v1666
    %1668 = vmatmul.f32.gmra.mxu0 %v1647
    %v1669 = vpop.f32.mrf.mxu0
    %v1670 = vadd.f32 0.0, %v1669
    %1671 = vdwg.mxu0
    %v1672 = vadd.f32 %v1515, %v1667
    %v1673 = vadd.f32 %v1516, %v1670
    %v1674 = vperm.slane %v1021, 1
    %v1675 = vadd.f32 %v1672, %v1674
    %v1676 = vadd.f32 %v1673, %v1674
    %v1677 = vadd.f32 %v1675, %v1009
    %v1678 = vadd.f32 %v1676, %v1010
    %v1679 = vsel %vm94, %v1677, 0.0
    %1680 = vadd.xlane.f32.xlu0 %v1679
    %v1681 = vpop.xlane.xlu0 %1680
    %v1682 = vsel %vm94, %v1678, 0.0
    %1683 = vadd.xlane.f32.xlu0 %v1682
    %v1684 = vpop.xlane.xlu0 %1683
    %v1685 = vmul.f32 %v1681, %v107
    %v1686 = vmul.f32 %v1684, %v107
    %v1687 = vsub.f32 %v1677, %v1685
    %v1688 = vsub.f32 %v1678, %v1686
    %v1689 = vmul.f32 %v1687, %v1687
    %v1690 = vmul.f32 %v1688, %v1688
    %v1691 = vsel %vm94, %v1689, 0.0
    %1692 = vadd.xlane.f32.xlu0 %v1691
    %v1693 = vpop.xlane.xlu0 %1692
    %v1694 = vsel %vm94, %v1690, 0.0
    %1695 = vadd.xlane.f32.xlu0 %v1694
    %v1696 = vpop.xlane.xlu0 %1695
    %v1697 = vmul.f32 %v1693, %v107
    %v1698 = vmul.f32 %v1696, %v107
    %v1699 = vadd.f32 %v1697, 1e-12
    %v1700 = vadd.f32 %v1698, 1e-12
    %v1701 = vrsqrt.pop %v1699
    %v1702 = vmul.f32 %v1701, %v1699
    %v1703 = vmul.f32 %v1702, %v1701
    %v1704 = vmul.f32 0.5, %v1703
    %v1705 = vsub.f32 1.5, %v1704
    %v1706 = vmul.f32 %v1701, %v1705
    %vm1707 = vweird.f32 %v1699
    %vm1708 = vweird.f32 %v1701
    %vm1709 = vmor %vm1707, %vm1708
    %v1710 = vsel %vm1709, %v1701, %v1706
    %v1711 = vrsqrt.pop %v1700
    %v1712 = vmul.f32 %v1711, %v1700
    %v1713 = vmul.f32 %v1712, %v1711
    %v1714 = vmul.f32 0.5, %v1713
    %v1715 = vsub.f32 1.5, %v1714
    %v1716 = vmul.f32 %v1711, %v1715
    %vm1717 = vweird.f32 %v1700
    %vm1718 = vweird.f32 %v1711
    %vm1719 = vmor %vm1717, %vm1718
    %v1720 = vsel %vm1719, %v1711, %v1716
    %v1721 = vmul.f32 %v1687, %v1710
    %v1722 = vmul.f32 %v1688, %v1720
    %v1723 = vperm.slane %v1021, 4
    %v1724 = vmul.f32 %v1721, %v1723
    %v1725 = vmul.f32 %v1722, %v1723
    %v1726 = vperm.slane %v1021, 5
    %v1727 = vadd.f32 %v1724, %v1726
    %v1728 = vadd.f32 %v1725, %v1726
    %v1729 = vperm.slane %v1021, 2
    %v1731 = vsel %vm94, %v1727, 0
    %v1734 = vsel %vm94, %v1728, 0
    %1736 = vmatpush.msra.mxu0 0.0
    %1737 = vmatpush.msra.mxu0 0.0
    %1738 = vmatpush.msra.mxu0 0.0
    %1739 = vmatpush.msra.mxu0 0.0
    %1740 = vmatpush.msra.mxu0 0.0
    %1741 = vmatpush.msra.mxu0 0.0
    %1742 = vmatpush.msra.mxu0 0.0
    %1743 = vmatpush.msra.mxu0 0.0
    %1744 = vmatpush.msra.mxu0 0.0
    %1745 = vmatpush.msra.mxu0 0.0
    %1746 = vmatpush.msra.mxu0 0.0
    %1747 = vmatpush.msra.mxu0 0.0
    %1748 = vmatpush.msra.mxu0 %v1019
    %1749 = vmatpush.msra.mxu0 %v1017
    %1750 = vmatpush.msra.mxu0 %v1015
    %1751 = vmatpush.msra.mxu0 %v1013
    %1752 = vmatmul.f32.gmra.mxu0 %v1731
    %v1753 = vpop.f32.mrf.mxu0
    %v1754 = vadd.f32 %v1729, %v1753
    %1755 = vmatmul.f32.gmra.mxu0 %v1734
    %v1756 = vpop.f32.mrf.mxu0
    %v1757 = vadd.f32 %v1729, %v1756
    %1758 = vdwg.mxu0
    %v1759 = vmul.f32 %v1754, 0.5
    %v1760 = vmul.f32 %v1757, 0.5
    %v1761 = vmul.f32 %v1754, 0.044715
    %v1762 = vmul.f32 %v1757, 0.044715
    %v1763 = vmul.f32 %v1761, %v1754
    %v1764 = vmul.f32 %v1762, %v1757
    %v1765 = vmul.f32 %v1763, %v1754
    %v1766 = vmul.f32 %v1764, %v1757
    %v1767 = vadd.f32 %v1754, %v1765
    %v1768 = vadd.f32 %v1757, %v1766
    %v1769 = vmul.f32 %v1767, 0.7978846
    %v1770 = vmul.f32 %v1768, 0.7978846
    %v1771 = vtanh.pop %v1769
    %v1772 = vtanh.pop %v1770
    %v1773 = vadd.f32 %v1771, 1.0
    %v1774 = vadd.f32 %v1772, 1.0
    %v1775 = vmul.f32 %v1759, %v1773
    %v1776 = vmul.f32 %v1760, %v1774
    %s1777 = scalar_lea.vmem %s4, 64
    %v1778 = vld [vmem:[%s1777] sm:$0xff]
    %v1779 = vld [vmem:[%s1777 + $0x8] sm:$0xff]
    %v1780 = vld [vmem:[%s1777 + $0x10] sm:$0xff]
    %v1781 = vld [vmem:[%s1777 + $0x18] sm:$0xff]
    %v1782 = vld [vmem:[%s1777 + $0x20] sm:$0xff]
    %v1783 = vld [vmem:[%s1777 + $0x28] sm:$0xff]
    %v1784 = vld [vmem:[%s1777 + $0x30] sm:$0xff]
    %v1785 = vld [vmem:[%s1777 + $0x38] sm:$0xff]
    %v1786 = vperm.slane %v1021, 3
    %v1788 = vsel %vm929, %v1775, 0
    %v1791 = vsel %vm929, %v1776, 0
    %1793 = vmatpush.msra.mxu0 0.0
    %1794 = vmatpush.msra.mxu0 0.0
    %1795 = vmatpush.msra.mxu0 0.0
    %1796 = vmatpush.msra.mxu0 0.0
    %1797 = vmatpush.msra.mxu0 0.0
    %1798 = vmatpush.msra.mxu0 0.0
    %1799 = vmatpush.msra.mxu0 0.0
    %1800 = vmatpush.msra.mxu0 0.0
    %1801 = vmatpush.msra.mxu0 %v1785
    %1802 = vmatpush.msra.mxu0 %v1784
    %1803 = vmatpush.msra.mxu0 %v1783
    %1804 = vmatpush.msra.mxu0 %v1782
    %1805 = vmatpush.msra.mxu0 %v1781
    %1806 = vmatpush.msra.mxu0 %v1780
    %1807 = vmatpush.msra.mxu0 %v1779
    %1808 = vmatpush.msra.mxu0 %v1778
    %1809 = vmatmul.f32.gmra.mxu0 %v1788
    %v1810 = vpop.f32.mrf.mxu0
    %v1811 = vadd.f32 %v1786, %v1810
    %1812 = vmatmul.f32.gmra.mxu0 %v1791
    %v1813 = vpop.f32.mrf.mxu0
    %v1814 = vadd.f32 %v1786, %v1813
    %1815 = vdwg.mxu0
    %v1816 = vadd.f32 %v1811, %v1727
    %v1817 = vadd.f32 %v1814, %v1728
    %v1818 = vsel %vm94, %v1816, 0.0
    %1819 = vadd.xlane.f32.xlu0 %v1818
    %v1820 = vpop.xlane.xlu0 %1819
    %v1821 = vsel %vm94, %v1817, 0.0
    %1822 = vadd.xlane.f32.xlu0 %v1821
    %v1823 = vpop.xlane.xlu0 %1822
    %v1824 = vmul.f32 %v1820, %v107
    %v1825 = vmul.f32 %v1823, %v107
    %v1826 = vsub.f32 %v1816, %v1824
    %v1827 = vsub.f32 %v1817, %v1825
    %v1828 = vmul.f32 %v1826, %v1826
    %v1829 = vmul.f32 %v1827, %v1827
    %v1830 = vsel %vm94, %v1828, 0.0
    %1831 = vadd.xlane.f32.xlu0 %v1830
    %v1832 = vpop.xlane.xlu0 %1831
    %v1833 = vsel %vm94, %v1829, 0.0
    %1834 = vadd.xlane.f32.xlu0 %v1833
    %v1835 = vpop.xlane.xlu0 %1834
    %v1836 = vmul.f32 %v1832, %v107
    %v1837 = vmul.f32 %v1835, %v107
    %v1838 = vadd.f32 %v1836, 1e-12
    %v1839 = vadd.f32 %v1837, 1e-12
    %v1840 = vrsqrt.pop %v1838
    %v1841 = vmul.f32 %v1840, %v1838
    %v1842 = vmul.f32 %v1841, %v1840
    %v1843 = vmul.f32 0.5, %v1842
    %v1844 = vsub.f32 1.5, %v1843
    %v1845 = vmul.f32 %v1840, %v1844
    %vm1846 = vweird.f32 %v1838
    %vm1847 = vweird.f32 %v1840
    %vm1848 = vmor %vm1846, %vm1847
    %v1849 = vsel %vm1848, %v1840, %v1845
    %v1850 = vrsqrt.pop %v1839
    %v1851 = vmul.f32 %v1850, %v1839
    %v1852 = vmul.f32 %v1851, %v1850
    %v1853 = vmul.f32 0.5, %v1852
    %v1854 = vsub.f32 1.5, %v1853
    %v1855 = vmul.f32 %v1850, %v1854
    %vm1856 = vweird.f32 %v1839
    %vm1857 = vweird.f32 %v1850
    %vm1858 = vmor %vm1856, %vm1857
    %v1859 = vsel %vm1858, %v1850, %v1855
    %v1860 = vmul.f32 %v1826, %v1849
    %v1861 = vmul.f32 %v1827, %v1859
    %v1862 = vperm.slane %v1021, 6
    %v1863 = vmul.f32 %v1860, %v1862
    %v1864 = vmul.f32 %v1861, %v1862
    %v1865 = vperm.slane %v1021, 7
    %v1866 = vadd.f32 %v1863, %v1865
    %v1867 = vadd.f32 %v1864, %v1865
    %v1868 = vld [vmem:[%s6 + $0x8] sm:$0xff]
    %v1869 = vld [vmem:[%s6 + $0x18] sm:$0xff]
    %v1870 = vld [vmem:[%s6 + $0x28] sm:$0xff]
    %v1871 = vld [vmem:[%s6 + $0x38] sm:$0xff]
    %v1872 = vld [vmem:[%s7 + $0x1] sm:$0x1]
    %v1873 = vperm.slane %v1872, 0
    %v1875 = vsel %vm94, %v1866, 0
    %v1878 = vsel %vm94, %v1867, 0
    %1880 = vmatpush.msra.mxu0 0.0
    %1881 = vmatpush.msra.mxu0 0.0
    %1882 = vmatpush.msra.mxu0 0.0
    %1883 = vmatpush.msra.mxu0 0.0
    %1884 = vmatpush.msra.mxu0 0.0
    %1885 = vmatpush.msra.mxu0 0.0
    %1886 = vmatpush.msra.mxu0 0.0
    %1887 = vmatpush.msra.mxu0 0.0
    %1888 = vmatpush.msra.mxu0 0.0
    %1889 = vmatpush.msra.mxu0 0.0
    %1890 = vmatpush.msra.mxu0 0.0
    %1891 = vmatpush.msra.mxu0 0.0
    %1892 = vmatpush.msra.mxu0 %v1871
    %1893 = vmatpush.msra.mxu0 %v1870
    %1894 = vmatpush.msra.mxu0 %v1869
    %1895 = vmatpush.msra.mxu0 %v1868
    %1896 = vmatmul.f32.gmra.mxu0 %v1875
    %v1897 = vpop.f32.mrf.mxu0
    %v1898 = vadd.f32 %v1873, %v1897
    %1899 = vmatmul.f32.gmra.mxu0 %v1878
    %v1900 = vpop.f32.mrf.mxu0
    %v1901 = vadd.f32 %v1873, %v1900
    %1902 = vdwg.mxu0
    %v1903 = vmul.f32 %v1898, 0.5
    %v1904 = vmul.f32 %v1901, 0.5
    %v1905 = vmul.f32 %v1898, 0.044715
    %v1906 = vmul.f32 %v1901, 0.044715
    %v1907 = vmul.f32 %v1905, %v1898
    %v1908 = vmul.f32 %v1906, %v1901
    %v1909 = vmul.f32 %v1907, %v1898
    %v1910 = vmul.f32 %v1908, %v1901
    %v1911 = vadd.f32 %v1898, %v1909
    %v1912 = vadd.f32 %v1901, %v1910
    %v1913 = vmul.f32 %v1911, 0.7978846
    %v1914 = vmul.f32 %v1912, 0.7978846
    %v1915 = vtanh.pop %v1913
    %v1916 = vtanh.pop %v1914
    %v1917 = vadd.f32 %v1915, 1.0
    %v1918 = vadd.f32 %v1916, 1.0
    %v1919 = vmul.f32 %v1903, %v1917
    %v1920 = vmul.f32 %v1904, %v1918
    %v1921 = vld [vmem:[%s7 + $0x2] sm:$0x1]
    %v1922 = vld [vmem:[%s7 + $0x3] sm:$0x1]
    %v1923 = vsel %vm94, %v1919, 0.0
    %1924 = vadd.xlane.f32.xlu0 %v1923
    %v1925 = vpop.xlane.xlu0 %1924
    %v1926 = vsel %vm94, %v1920, 0.0
    %1927 = vadd.xlane.f32.xlu0 %v1926
    %v1928 = vpop.xlane.xlu0 %1927
    %v1929 = vmul.f32 %v1925, %v107
    %v1930 = vmul.f32 %v1928, %v107
    %v1931 = vsub.f32 %v1919, %v1929
    %v1932 = vsub.f32 %v1920, %v1930
    %v1933 = vmul.f32 %v1931, %v1931
    %v1934 = vmul.f32 %v1932, %v1932
    %v1935 = vsel %vm94, %v1933, 0.0
    %1936 = vadd.xlane.f32.xlu0 %v1935
    %v1937 = vpop.xlane.xlu0 %1936
    %v1938 = vsel %vm94, %v1934, 0.0
    %1939 = vadd.xlane.f32.xlu0 %v1938
    %v1940 = vpop.xlane.xlu0 %1939
    %v1941 = vmul.f32 %v1937, %v107
    %v1942 = vmul.f32 %v1940, %v107
    %v1943 = vadd.f32 %v1941, 1e-12
    %v1944 = vadd.f32 %v1942, 1e-12
    %v1945 = vrsqrt.pop %v1943
    %v1946 = vmul.f32 %v1945, %v1943
    %v1947 = vmul.f32 %v1946, %v1945
    %v1948 = vmul.f32 0.5, %v1947
    %v1949 = vsub.f32 1.5, %v1948
    %v1950 = vmul.f32 %v1945, %v1949
    %vm1951 = vweird.f32 %v1943
    %vm1952 = vweird.f32 %v1945
    %vm1953 = vmor %vm1951, %vm1952
    %v1954 = vsel %vm1953, %v1945, %v1950
    %v1955 = vrsqrt.pop %v1944
    %v1956 = vmul.f32 %v1955, %v1944
    %v1957 = vmul.f32 %v1956, %v1955
    %v1958 = vmul.f32 0.5, %v1957
    %v1959 = vsub.f32 1.5, %v1958
    %v1960 = vmul.f32 %v1955, %v1959
    %vm1961 = vweird.f32 %v1944
    %vm1962 = vweird.f32 %v1955
    %vm1963 = vmor %vm1961, %vm1962
    %v1964 = vsel %vm1963, %v1955, %v1960
    %v1965 = vmul.f32 %v1931, %v1954
    %v1966 = vmul.f32 %v1932, %v1964
    %v1967 = vperm.slane %v1921, 0
    %v1968 = vmul.f32 %v1965, %v1967
    %v1969 = vmul.f32 %v1966, %v1967
    %v1970 = vperm.slane %v1922, 0
    %v1971 = vadd.f32 %v1968, %v1970
    %v1972 = vadd.f32 %v1969, %v1970
    %v1973 = vld [vmem:[%s6] sm:$0xff]
    %v1974 = vld [vmem:[%s6 + $0x10] sm:$0xff]
    %v1975 = vld [vmem:[%s6 + $0x20] sm:$0xff]
    %v1976 = vld [vmem:[%s6 + $0x30] sm:$0xff]
    %v1977 = vld [vmem:[%s7] sm:$0x1]
    %v1978 = vperm.slane %v1977, 0
    %v1980 = vsel %vm94, %v1971, 0
    %v1983 = vsel %vm94, %v1972, 0
    %1985 = vmatpush.msra.mxu0 0.0
    %1986 = vmatpush.msra.mxu0 0.0
    %1987 = vmatpush.msra.mxu0 0.0
    %1988 = vmatpush.msra.mxu0 0.0
    %1989 = vmatpush.msra.mxu0 0.0
    %1990 = vmatpush.msra.mxu0 0.0
    %1991 = vmatpush.msra.mxu0 0.0
    %1992 = vmatpush.msra.mxu0 0.0
    %1993 = vmatpush.msra.mxu0 0.0
    %1994 = vmatpush.msra.mxu0 0.0
    %1995 = vmatpush.msra.mxu0 0.0
    %1996 = vmatpush.msra.mxu0 0.0
    %1997 = vmatpush.msra.mxu0 %v1976
    %1998 = vmatpush.msra.mxu0 %v1975
    %1999 = vmatpush.msra.mxu0 %v1974
    %2000 = vmatpush.msra.mxu0 %v1973
    %2001 = vmatmul.f32.gmra.mxu0 %v1980
    %v2002 = vpop.f32.mrf.mxu0
    %v2003 = vadd.f32 %v1978, %v2002
    %2004 = vmatmul.f32.gmra.mxu0 %v1983
    %v2005 = vpop.f32.mrf.mxu0
    %v2006 = vadd.f32 %v1978, %v2005
    %2007 = vdwg.mxu0
    %2008 = vst [vmem:[#allocation2] sm:$0xff] %v2003
    %2009 = vst [vmem:[#allocation2 + $0x8] sm:$0xff] %v2006
    %2010 = vmax.xlane.f32.xlu0 %v2003
    %v2011 = vpop.xlane.xlu0 %2010
    %2012 = vmax.xlane.f32.xlu0 %v2006
    %v2013 = vpop.xlane.xlu0 %2012
    %v2014 = vsub.f32 %v2003, %v2011
    %v2015 = vsub.f32 %v2006, %v2013
    %v2016 = vmul.f32 %v2014, 1.442695
    %v2017 = vpow.pop %v2016
    %v2018 = vmul.f32 %v2015, 1.442695
    %v2019 = vpow.pop %v2018
    %2020 = vadd.xlane.f32.xlu0 %v2017
    %v2021 = vpop.xlane.xlu0 %2020
    %2022 = vadd.xlane.f32.xlu0 %v2019
    %v2023 = vpop.xlane.xlu0 %2022
    %v2024 = vlog2.pop %v2021
    %v2025 = vmul.f32 %v2024, 0.6931472
    %v2026 = vlog2.pop %v2023
    %v2027 = vmul.f32 %v2026, 0.6931472
    %v2028 = vsub.f32 %v2014, %v2025
    %v2029 = vsub.f32 %v2015, %v2027
    %2030 = vset.pattern.permute.xlu0 1
    %2031 = vperm.xlu0 %2030, %v33
    %v2032 = vpop.permute.xlu0 %2031
    %2033 = vset.pattern.permute.xlu0 1
    %2034 = vperm.xlu0 %2033, %v34
    %v2035 = vpop.permute.xlu0 %2034
    %vm2036 = vcmp.eq.s32.totalorder %v36, %v2032
    %vm2037 = vcmp.eq.s32.totalorder %v36, %v2035
    %v2038 = vsel %vm2036, 1, 0
    %v2039 = vsel %vm2037, 1, 0
    %v2040 = vcvt.s32.f32 %v2038
    %v2041 = vcvt.s32.f32 %v2039
    %v2042 = vmul.f32 %v2040, %v2028
    %v2043 = vmul.f32 %v2041, %v2029
    %2044 = vadd.xlane.f32.xlu0 %v2042
    %v2045 = vpop.xlane.xlu0 %2044
    %2046 = vadd.xlane.f32.xlu0 %v2043
    %v2047 = vpop.xlane.xlu0 %2046
    %v2048 = vsub.f32 0.0, %v2045
    %v2049 = vsub.f32 0.0, %v2047
    %vm2050 = vcmp.ge.s32.totalorder %v33, 0
    %vm2051 = vcmp.ge.s32.totalorder %v34, 0
    %v2052 = vsel %vm2050, 1, 0
    %v2053 = vsel %vm2051, 1, 0
    %v2054 = vcvt.s32.f32 %v2052
    %v2055 = vcvt.s32.f32 %v2053
    %v2056 = vmul.f32 %v2048, %v2054
    %v2057 = vmul.f32 %v2049, %v2055
    %vm2058 = vcmask 15368
    %v2059 = vsel %vm2058, %v2056, 0.0
    %v2060 = vsel %vm2058, %v2057, 0.0
    %v2061 = vadd.f32 %v2059, %v2060
    %v2062 = vrot.slane %v2061, 4
    %v2063 = vadd.f32 %v2061, %v2062
    %v2064 = vrot.slane %v2063, 2
    %v2065 = vadd.f32 %v2063, %v2064
    %v2066 = vrot.slane %v2065, 1
    %v2067 = vadd.f32 %v2065, %v2066
    %v2068 = vsel %vm2058, %v2054, 0.0
    %v2069 = vsel %vm2058, %v2055, 0.0
    %v2070 = vadd.f32 %v2068, %v2069
    %v2071 = vrot.slane %v2070, 4
    %v2072 = vadd.f32 %v2070, %v2071
    %v2073 = vrot.slane %v2072, 2
    %v2074 = vadd.f32 %v2072, %v2073
    %v2075 = vrot.slane %v2074, 1
    %v2076 = vadd.f32 %v2074, %v2075
    %v2077 = vrcp.pop %v2076
    %v2078 = vmul.f32 %v2076, %v2077
    %v2079 = vsub.f32 1.0, %v2078
    %v2080 = vmul.f32 %v2077, %v2079
    %v2081 = vadd.f32 %v2077, %v2080
    %vm2082 = vweird.f32 %v2076
    %vm2083 = vweird.f32 %v2077
    %vm2084 = vmor %vm2082, %vm2083
    %v2085 = vsel %vm2084, %v2077, %v2081
    %v2086 = vand.u32 2147483647, %v2076
    %vm2087 = vcmp.eq.f32.partialorder %v2086, 8.507059e+37
    %v2088 = vand.u32 %v2076, 2147483648
    %v2089 = vor.u32 1.1754944e-38, %v2088
    %v2090 = vsel %vm2087, %v2089, %v2085
    %v2091 = vmul.f32 %v2067, %v2090
    %2093 = vrot.lane.b32.xlu0 %v2091, 127
    %v2094 = vpop.permute.xlu0 %2093
    %vm2096 = vcmask 0
    %2097 = vst.msk [vmem:[#allocation4] sm:$0x1] %vm2096, %v2094
    // Predicated region
    $region34: #{bert_mlm_forward.1} parent=1 // pred_check
      _
    $region35: #{bert_mlm_forward.1} parent=1 // pred_check_branch
      %2099 = sbr.rel (0) target = $region37
    $region36: #{bert_mlm_forward.1} parent=1 // pred_region
      %2101 = vsyncadd [#allocation3], 0
      %s2102 = sshll.u32 [#allocation2], 4
      %s2103 = int_to_ptr.vmem [resolvable:$true] %s2102
      %s2104 = sshll.u32 %s8, 4
      %s2105 = int_to_ptr.hbm [resolvable:$true] %s2104
      %2110 = dma.vmem_to_hbm [thread:$0]  %s2103, 256, %s2105, [#allocation3], 128, 128, 8
    $region37: #{bert_mlm_forward.1} parent=1 // pred_fallthru
      _
    // Predicated region
    $region38: #{bert_mlm_forward.1} parent=1 // pred_check
      _
    $region39: #{bert_mlm_forward.1} parent=1 // pred_check_branch
      %2112 = sbr.rel (0) target = $region41
    $region40: #{bert_mlm_forward.1} parent=1 // pred_region
      %2114 = vsyncadd [#allocation5], 0
      %s2116 = sshll.u32 [#allocation4], 4
      %s2117 = int_to_ptr.vmem [resolvable:$true] %s2116
      %s2118 = sshll.u32 %s9, 4
      %s2119 = int_to_ptr.hbm [resolvable:$true] %s2118
      %2121 = dma.vmem_to_hbm [thread:$0]  %s2117, 16, %s2119, [#allocation5]
    $region41: #{bert_mlm_forward.1} parent=1 // pred_fallthru
      _
    // Predicated region
    $region42: #{bert_mlm_forward.1} parent=1 // pred_check
      _
    $region43: #{bert_mlm_forward.1} parent=1 // pred_check_branch
      %2123 = sbr.rel (0) target = $region45
    $region44: #{bert_mlm_forward.1} parent=1 // pred_region
      %2125 = dma.done [#allocation3], 256
    $region45: #{bert_mlm_forward.1} parent=1 // pred_fallthru
      _
    // Predicated region
    $region46: #{bert_mlm_forward.1} parent=1 // pred_check
      _
    $region47: #{bert_mlm_forward.1} parent=1 // pred_check_branch
      %2127 = sbr.rel (0) target = $region49
    $region48: #{bert_mlm_forward.1} parent=1 // pred_region
      %2129 = dma.done [#allocation5], 16
    $region49: #{bert_mlm_forward.1} parent=1 // pred_fallthru
      _
    %2130 = vsyncpa [#allocation3], 1
    %2131 = vsyncpa [#allocation5], 1

</llo_original>
